<compile_context>
chip_gen: v5e
topology: v5e:2x2
jax: 0.10.0
libtpu: 0.0.40
codegen_flags: <defaults>
</compile_context>

<pallas_src>
import functools
import math

import jax
import jax.numpy as jnp
from jax import lax
from jax.experimental import pallas as pl
from jax.experimental.pallas import tpu as pltpu


def _adaptive_bounds(size, pool):
    """PyTorch adaptive-pool window bounds: [floor(i*S/P), ceil((i+1)*S/P))."""
    return tuple((math.floor(i * size / pool), math.ceil((i + 1) * size / pool))
                 for i in range(pool))


def _pick_batch_tile(B, hw_pad, K, Cout, nc, PP, *, vmem_budget=32 << 20):
    """Largest divisor of B such that
       * grid has >= 2 steps (TB <= B//2) so v7x can use both TensorCores and
         the pipeline can double-buffer,
       * everything resident per grid step (double-buffered bf16 patch tile,
         f32 conv scratch, weights, cascading in / logits out) fits a budget
         that is safe on v7x's 64 MiB VMEM (and trivially on v5e/v6e)."""
    fixed = 2 * (K * Cout * 2            # conv weight (bf16), double-buffered
                 + PP * Cout * nc * 4    # fc pooled-part weight (f32)
                 + nc * nc * 4           # fc cascading-part weight (f32)
                 + Cout * 4 + nc * 4)    # biases

    def per_step(tb):
        patches = 2 * tb * hw_pad * K * 2        # double-buffered bf16 input tile
        conv = tb * hw_pad * Cout * 4            # f32 conv scratch (single copy)
        io = 2 * (tb * nc * 4) * 2               # cascading in + logits out, 2x buf
        return fixed + patches + conv + io

    cap = max(1, B // 2)
    best = 1
    for d in range(1, B + 1):
        if B % d == 0 and d <= cap and per_step(d) <= vmem_budget:
            best = d
    return best


def _head_kernel(patches_ref, wconv_ref, bconv_ref, alpha_ref, casc_ref,
                 wpool_ref, wcasc_ref, bfc_ref, out_ref, conv_ref,
                 *, TB, HWpad, Wo, Cout, bins_h, bins_w):
    # --- conv: ReLU on the patches + ONE 2-D MXU matmul for the whole tile ---
    p = jnp.maximum(patches_ref[...], 0.0)                       # (TB*HWpad, K) bf16
    conv_ref[...] = (jnp.dot(p, wconv_ref[...],
                             preferred_element_type=jnp.float32)
                     + bconv_ref[...])                           # (TB*HWpad, Cout) f32

    # --- SDNPool: adaptive max + avg share the same VMEM row reads ---------
    alpha = alpha_ref[0]                                         # SMEM scalar
    one_minus_alpha = 1.0 - alpha                                # hoisted

    rows = []
    for b in range(TB):                                          # static unroll
        base = b * HWpad
        feats = []
        for (hs, he) in bins_h:
            for (ws, we) in bins_w:
                mx = None
                sm = None
                for h in range(hs, he):
                    for w in range(ws, we):
                        s = conv_ref[pl.ds(base + h * Wo + w, 1), :]   # (1, Cout)
                        mx = s if mx is None else jnp.maximum(mx, s)
                        sm = s if sm is None else sm + s
                avg = sm * (1.0 / float((he - hs) * (we - ws)))
                feats.append(alpha * mx + one_minus_alpha * avg)       # (1, Cout)
        rows.append(jnp.concatenate(feats, axis=-1))                   # (1, PP*Cout)
    feat = rows[0] if TB == 1 else jnp.concatenate(rows, axis=0)       # (TB, PP*Cout)

    # --- fc: one matmul on pooled features + one on the cascading input -----
    out = jnp.dot(feat, wpool_ref[...], preferred_element_type=jnp.float32)
    out = out + jnp.dot(casc_ref[:, 0, :], wcasc_ref[...],
                        preferred_element_type=jnp.float32)
    out = out + bfc_ref[...]
    out_ref[:, 0, :] = out.astype(out_ref.dtype)


def conv_cascading_head(x, cascading_input, params, *, pool_size=4):
    """x: (B, Cin, H, W) NCHW float32; cascading_input: (B, num_classes)."""
    B, Cin, H, W = x.shape
    Cout = Cin // 2
    KH = KW = 3
    stride = 2
    Ho = (H - KH) // stride + 1
    Wo = (W - KW) // stride + 1
    P = pool_size
    PP = P * P
    nc = params["fc_b"].shape[0]
    K = Cin * KH * KW
    HoWo = Ho * Wo
    HWpad = ((HoWo + 7) // 8) * 8          # sublane-aligned rows per sample

    # --- glue: im2col patch extraction (pure data movement, see TODO above) ---
    cols = []
    for ci in range(Cin):
        for kh in range(KH):
            for kw in range(KW):
                cols.append(x[:, ci, kh:kh + stride * Ho:stride,
                              kw:kw + stride * Wo:stride])
    patches = jnp.stack(cols, axis=-1).reshape(B, HoWo, K)
    if HWpad != HoWo:
        patches = jnp.pad(patches, ((0, 0), (0, HWpad - HoWo), (0, 0)))
    patches = patches.reshape(B * HWpad, K).astype(jnp.bfloat16)

    # --- glue: parameter re-layout (trace-time, outside the kernel) ---------
    wconv = params["conv_w"].reshape(Cout, K).T.astype(jnp.bfloat16)   # (K, Cout)
    bconv = params["conv_b"].reshape(1, Cout).astype(jnp.float32)

    wfc = params["fc_w"]                                               # (nc, Cout*PP + nc)
    # PyTorch flattens the pooled map as (c, ph, pw); the kernel packs features
    # as (ph, pw, c) -> permute the fc columns to match (free, trace-time).
    wpool = wfc[:, :Cout * PP].reshape(nc, Cout, P, P)
    wpool = jnp.transpose(wpool, (2, 3, 1, 0)).reshape(PP * Cout, nc).astype(jnp.float32)
    wcasc = wfc[:, Cout * PP:].T.astype(jnp.float32)                   # (nc, nc)
    bfc = params["fc_b"].reshape(1, nc).astype(jnp.float32)
    alpha = params["alpha"].reshape(1).astype(jnp.float32)

    bins_h = _adaptive_bounds(Ho, P)
    bins_w = _adaptive_bounds(Wo, P)

    casc3 = cascading_input.reshape(B, 1, nc).astype(jnp.float32)

    TB = _pick_batch_tile(B, HWpad, K, Cout, nc, PP)
    grid = (B // TB,)

    kernel = functools.partial(_head_kernel, TB=TB, HWpad=HWpad, Wo=Wo,
                               Cout=Cout, bins_h=bins_h, bins_w=bins_w)

    out = pl.pallas_call(
        kernel,
        out_shape=jax.ShapeDtypeStruct((B, 1, nc), jnp.float32),
        grid=grid,
        in_specs=[
            pl.BlockSpec((TB * HWpad, K), lambda b: (b, 0)),        # patches (bf16)
            pl.BlockSpec((K, Cout), lambda b: (0, 0)),              # conv weight (bf16)
            pl.BlockSpec((1, Cout), lambda b: (0, 0)),              # conv bias
            pl.BlockSpec(memory_space=pltpu.MemorySpace.SMEM),      # alpha scalar
            pl.BlockSpec((TB, 1, nc), lambda b: (b, 0, 0)),         # cascading input
            pl.BlockSpec((PP * Cout, nc), lambda b: (0, 0)),        # fc (pooled part)
            pl.BlockSpec((nc, nc), lambda b: (0, 0)),               # fc (cascading part)
            pl.BlockSpec((1, nc), lambda b: (0, 0)),                # fc bias
        ],
        out_specs=pl.BlockSpec((TB, 1, nc), lambda b: (b, 0, 0)),
        scratch_shapes=[pltpu.VMEM((TB * HWpad, Cout), jnp.float32)],   # conv scratch
        compiler_params=pltpu.CompilerParams(
            dimension_semantics=("parallel",),
            vmem_limit_bytes=48 << 20),
    )(patches, wconv, bconv, alpha, casc3, wpool, wcasc, bfc)

    return out.reshape(B, nc)


def _reference(x, cascading_input, params, pool_size=4):
    """Pure-JAX reference of the PyTorch forward pass (f32 throughout)."""
    B, Cin, H, W = x.shape
    Cout = Cin // 2
    P = pool_size
    xr = jnp.maximum(x, 0.0)
    conv = lax.conv_general_dilated(
        xr, params["conv_w"], window_strides=(2, 2), padding="VALID",
        dimension_numbers=("NCHW", "OIHW", "NCHW"))
    conv = conv + params["conv_b"].reshape(1, Cout, 1, 1)
    Ho, Wo = conv.shape[2], conv.shape[3]
    bh = _adaptive_bounds(Ho, P)
    bw = _adaptive_bounds(Wo, P)
    mx = jnp.stack([jnp.stack([jnp.max(conv[:, :, hs:he, ws:we], axis=(2, 3))
                               for (ws, we) in bw], axis=-1)
                    for (hs, he) in bh], axis=-2)                  # (B, Cout, P, P)
    av = jnp.stack([jnp.stack([jnp.mean(conv[:, :, hs:he, ws:we], axis=(2, 3))
                               for (ws, we) in bw], axis=-1)
                    for (hs, he) in bh], axis=-2)
    a = params["alpha"][0]
    mixed = a * mx + (1.0 - a) * av
    flat = mixed.reshape(B, -1)
    feat = jnp.concatenate([flat, cascading_input], axis=-1)
    return feat @ params["fc_w"].T + params["fc_b"]


if __name__ == "__main__":
    B, Cin, H, W = 2, 4, 16, 16
    num_classes = 10
    pool_size = 4
    Cout = Cin // 2
    F_in = Cout * pool_size ** 2 + num_classes

    key = jax.random.PRNGKey(0)
    ks = jax.random.split(key, 8)
    x = jax.random.normal(ks[0], (B, Cin, H, W), jnp.float32)
    cascading_input = jax.random.normal(ks[1], (B, num_classes), jnp.float32)

    params = {
        "alpha": jax.random.uniform(ks[2], (1,), jnp.float32),              # torch.rand(1)
        "conv_w": 0.1 * jax.random.normal(ks[3], (Cout, Cin, 3, 3), jnp.float32),
        "conv_b": 0.1 * jax.random.normal(ks[4], (Cout,), jnp.float32),
        "fc_w": 0.1 * jax.random.normal(ks[5], (num_classes, F_in), jnp.float32),
        "fc_b": 0.1 * jax.random.normal(ks[6], (num_classes,), jnp.float32),
    }

    out = conv_cascading_head(x, cascading_input, params, pool_size=pool_size)
    out = jax.block_until_ready(out)

    ref = _reference(x, cascading_input, params, pool_size=pool_size)
    assert out.shape == (B, num_classes)
    assert jnp.allclose(out, ref, atol=2e-2, rtol=2e-2), (out, ref)
    print("KERNEL_OK")
</pallas_src>

<mosaic_0001>
module attributes {stable_mosaic.version = 11 : i64} {
  func.func @_head_kernel(%arg0: i32, %arg1: memref<56x36xbf16, #tpu.memory_space<vmem>>, %arg2: memref<36x2xbf16, #tpu.memory_space<vmem>>, %arg3: memref<1x2xf32, #tpu.memory_space<vmem>>, %arg4: memref<1xf32, #tpu.memory_space<smem>>, %arg5: memref<1x1x10xf32, #tpu.memory_space<vmem>>, %arg6: memref<32x10xf32, #tpu.memory_space<vmem>>, %arg7: memref<10x10xf32, #tpu.memory_space<vmem>>, %arg8: memref<1x10xf32, #tpu.memory_space<vmem>>, %arg9: memref<1x1x10xf32, #tpu.memory_space<vmem>>, %arg10: memref<56x2xf32, #tpu.memory_space<vmem>>) attributes {dimension_semantics = [#tpu.dimension_semantics<parallel>], iteration_bounds = array<i64: 2>, scalar_prefetch = 0 : i64, scratch_operands = 1 : i64, tpu.core_type = #tpu.core_type<tc>, window_params = [{transform_indices = @transform_0, window_bounds = array<i64: 56, 36>}, {pipeline_mode = #tpu.pipeline_mode<synchronous>, transform_indices = @transform_1, window_bounds = array<i64: 36, 2>}, {pipeline_mode = #tpu.pipeline_mode<synchronous>, transform_indices = @transform_2, window_bounds = array<i64: 1, 2>}, {transform_indices = @transform_3, window_bounds = array<i64: 1>}, {transform_indices = @transform_4, window_bounds = array<i64: 1, 1, 10>}, {pipeline_mode = #tpu.pipeline_mode<synchronous>, transform_indices = @transform_5, window_bounds = array<i64: 32, 10>}, {pipeline_mode = #tpu.pipeline_mode<synchronous>, transform_indices = @transform_6, window_bounds = array<i64: 10, 10>}, {pipeline_mode = #tpu.pipeline_mode<synchronous>, transform_indices = @transform_7, window_bounds = array<i64: 1, 10>}, {transform_indices = @transform_8, window_bounds = array<i64: 1, 1, 10>}]} {
    %c0 = arith.constant 0 : index
    %c0_0 = arith.constant 0 : index
    %0 = vector.load %arg1[%c0, %c0_0] : memref<56x36xbf16, #tpu.memory_space<vmem>>, vector<56x36xbf16>
    %cst = arith.constant 0.000000e+00 : bf16
    %1 = vector.broadcast %cst : bf16 to vector<56x36xbf16>
    %2 = arith.maximumf %0, %1 : vector<56x36xbf16>
    %c0_1 = arith.constant 0 : index
    %c0_2 = arith.constant 0 : index
    %3 = vector.load %arg2[%c0_1, %c0_2] : memref<36x2xbf16, #tpu.memory_space<vmem>>, vector<36x2xbf16>
    %cst_3 = arith.constant dense<0.000000e+00> : vector<56x2xf32>
    %4 = tpu.matmul %2, %3, %cst_3 {dimension_numbers = #tpu.dot_dimension_numbers<[1], [0], [0], [1], [0, 0, 1, 1], [], []>} : vector<56x36xbf16>, vector<36x2xbf16>, vector<56x2xf32> -> vector<56x2xf32>
    %c0_4 = arith.constant 0 : index
    %c0_5 = arith.constant 0 : index
    %5 = vector.load %arg3[%c0_4, %c0_5] : memref<1x2xf32, #tpu.memory_space<vmem>>, vector<1x2xf32>
    %6 = vector.broadcast %5 : vector<1x2xf32> to vector<56x2xf32>
    %7 = arith.addf %4, %6 : vector<56x2xf32>
    %c0_6 = arith.constant 0 : index
    %c0_7 = arith.constant 0 : index
    %8 = vector.load %arg10[%c0_6, %c0_7] : memref<56x2xf32, #tpu.memory_space<vmem>>, vector<56x2xf32>
    tpu.vector_store %arg10[%c0_6, %c0_7], %7 {strides = array<i32>} : memref<56x2xf32, #tpu.memory_space<vmem>>, vector<56x2xf32>,
    %c0_8 = arith.constant 0 : index
    %9 = memref.load %arg4[%c0_8] : memref<1xf32, #tpu.memory_space<smem>>
    %cst_9 = arith.constant 1.000000e+00 : f32
    %10 = arith.subf %cst_9, %9 : f32
    %c0_10 = arith.constant 0 : index
    %c0_11 = arith.constant 0 : index
    %11 = vector.load %arg10[%c0_10, %c0_11] : memref<56x2xf32, #tpu.memory_space<vmem>>, vector<1x2xf32>
    %c1 = arith.constant 1 : index
    %c0_12 = arith.constant 0 : index
    %12 = vector.load %arg10[%c1, %c0_12] : memref<56x2xf32, #tpu.memory_space<vmem>>, vector<1x2xf32>
    %13 = arith.maximumf %11, %12 : vector<1x2xf32>
    %14 = arith.addf %11, %12 : vector<1x2xf32>
    %c7 = arith.constant 7 : index
    %c0_13 = arith.constant 0 : index
    %15 = vector.load %arg10[%c7, %c0_13] : memref<56x2xf32, #tpu.memory_space<vmem>>, vector<1x2xf32>
    %16 = arith.maximumf %13, %15 : vector<1x2xf32>
    %17 = arith.addf %14, %15 : vector<1x2xf32>
    %c8 = arith.constant 8 : index
    %c0_14 = arith.constant 0 : index
    %18 = vector.load %arg10[%c8, %c0_14] : memref<56x2xf32, #tpu.memory_space<vmem>>, vector<1x2xf32>
    %19 = arith.maximumf %16, %18 : vector<1x2xf32>
    %20 = arith.addf %17, %18 : vector<1x2xf32>
    %cst_15 = arith.constant 2.500000e-01 : f32
    %21 = vector.broadcast %cst_15 : f32 to vector<1x2xf32>
    %22 = arith.mulf %20, %21 : vector<1x2xf32>
    %23 = vector.broadcast %9 : f32 to vector<1x2xf32>
    %24 = arith.mulf %23, %19 : vector<1x2xf32>
    %25 = vector.broadcast %10 : f32 to vector<1x2xf32>
    %26 = arith.mulf %25, %22 : vector<1x2xf32>
    %27 = arith.addf %24, %26 : vector<1x2xf32>
    %c1_16 = arith.constant 1 : index
    %c0_17 = arith.constant 0 : index
    %28 = vector.load %arg10[%c1_16, %c0_17] : memref<56x2xf32, #tpu.memory_space<vmem>>, vector<1x2xf32>
    %c2 = arith.constant 2 : index
    %c0_18 = arith.constant 0 : index
    %29 = vector.load %arg10[%c2, %c0_18] : memref<56x2xf32, #tpu.memory_space<vmem>>, vector<1x2xf32>
    %30 = arith.maximumf %28, %29 : vector<1x2xf32>
    %31 = arith.addf %28, %29 : vector<1x2xf32>
    %c3 = arith.constant 3 : index
    %c0_19 = arith.constant 0 : index
    %32 = vector.load %arg10[%c3, %c0_19] : memref<56x2xf32, #tpu.memory_space<vmem>>, vector<1x2xf32>
    %33 = arith.maximumf %30, %32 : vector<1x2xf32>
    %34 = arith.addf %31, %32 : vector<1x2xf32>
    %c8_20 = arith.constant 8 : index
    %c0_21 = arith.constant 0 : index
    %35 = vector.load %arg10[%c8_20, %c0_21] : memref<56x2xf32, #tpu.memory_space<vmem>>, vector<1x2xf32>
    %36 = arith.maximumf %33, %35 : vector<1x2xf32>
    %37 = arith.addf %34, %35 : vector<1x2xf32>
    %c9 = arith.constant 9 : index
    %c0_22 = arith.constant 0 : index
    %38 = vector.load %arg10[%c9, %c0_22] : memref<56x2xf32, #tpu.memory_space<vmem>>, vector<1x2xf32>
    %39 = arith.maximumf %36, %38 : vector<1x2xf32>
    %40 = arith.addf %37, %38 : vector<1x2xf32>
    %c10 = arith.constant 10 : index
    %c0_23 = arith.constant 0 : index
    %41 = vector.load %arg10[%c10, %c0_23] : memref<56x2xf32, #tpu.memory_space<vmem>>, vector<1x2xf32>
    %42 = arith.maximumf %39, %41 : vector<1x2xf32>
    %43 = arith.addf %40, %41 : vector<1x2xf32>
    %cst_24 = arith.constant 0.166666672 : f32
    %44 = vector.broadcast %cst_24 : f32 to vector<1x2xf32>
    %45 = arith.mulf %43, %44 : vector<1x2xf32>
    %46 = vector.broadcast %9 : f32 to vector<1x2xf32>
    %47 = arith.mulf %46, %42 : vector<1x2xf32>
    %48 = vector.broadcast %10 : f32 to vector<1x2xf32>
    %49 = arith.mulf %48, %45 : vector<1x2xf32>
    %50 = arith.addf %47, %49 : vector<1x2xf32>
    %c3_25 = arith.constant 3 : index
    %c0_26 = arith.constant 0 : index
    %51 = vector.load %arg10[%c3_25, %c0_26] : memref<56x2xf32, #tpu.memory_space<vmem>>, vector<1x2xf32>
    %c4 = arith.constant 4 : index
    %c0_27 = arith.constant 0 : index
    %52 = vector.load %arg10[%c4, %c0_27] : memref<56x2xf32, #tpu.memory_space<vmem>>, vector<1x2xf32>
    %53 = arith.maximumf %51, %52 : vector<1x2xf32>
    %54 = arith.addf %51, %52 : vector<1x2xf32>
    %c5 = arith.constant 5 : index
    %c0_28 = arith.constant 0 : index
    %55 = vector.load %arg10[%c5, %c0_28] : memref<56x2xf32, #tpu.memory_space<vmem>>, vector<1x2xf32>
    %56 = arith.maximumf %53, %55 : vector<1x2xf32>
    %57 = arith.addf %54, %55 : vector<1x2xf32>
    %c10_29 = arith.constant 10 : index
    %c0_30 = arith.constant 0 : index
    %58 = vector.load %arg10[%c10_29, %c0_30] : memref<56x2xf32, #tpu.memory_space<vmem>>, vector<1x2xf32>
    %59 = arith.maximumf %56, %58 : vector<1x2xf32>
    %60 = arith.addf %57, %58 : vector<1x2xf32>
    %c11 = arith.constant 11 : index
    %c0_31 = arith.constant 0 : index
    %61 = vector.load %arg10[%c11, %c0_31] : memref<56x2xf32, #tpu.memory_space<vmem>>, vector<1x2xf32>
    %62 = arith.maximumf %59, %61 : vector<1x2xf32>
    %63 = arith.addf %60, %61 : vector<1x2xf32>
    %c12 = arith.constant 12 : index
    %c0_32 = arith.constant 0 : index
    %64 = vector.load %arg10[%c12, %c0_32] : memref<56x2xf32, #tpu.memory_space<vmem>>, vector<1x2xf32>
    %65 = arith.maximumf %62, %64 : vector<1x2xf32>
    %66 = arith.addf %63, %64 : vector<1x2xf32>
    %cst_33 = arith.constant 0.166666672 : f32
    %67 = vector.broadcast %cst_33 : f32 to vector<1x2xf32>
    %68 = arith.mulf %66, %67 : vector<1x2xf32>
    %69 = vector.broadcast %9 : f32 to vector<1x2xf32>
    %70 = arith.mulf %69, %65 : vector<1x2xf32>
    %71 = vector.broadcast %10 : f32 to vector<1x2xf32>
    %72 = arith.mulf %71, %68 : vector<1x2xf32>
    %73 = arith.addf %70, %72 : vector<1x2xf32>
    %c5_34 = arith.constant 5 : index
    %c0_35 = arith.constant 0 : index
    %74 = vector.load %arg10[%c5_34, %c0_35] : memref<56x2xf32, #tpu.memory_space<vmem>>, vector<1x2xf32>
    %c6 = arith.constant 6 : index
    %c0_36 = arith.constant 0 : index
    %75 = vector.load %arg10[%c6, %c0_36] : memref<56x2xf32, #tpu.memory_space<vmem>>, vector<1x2xf32>
    %76 = arith.maximumf %74, %75 : vector<1x2xf32>
    %77 = arith.addf %74, %75 : vector<1x2xf32>
    %c12_37 = arith.constant 12 : index
    %c0_38 = arith.constant 0 : index
    %78 = vector.load %arg10[%c12_37, %c0_38] : memref<56x2xf32, #tpu.memory_space<vmem>>, vector<1x2xf32>
    %79 = arith.maximumf %76, %78 : vector<1x2xf32>
    %80 = arith.addf %77, %78 : vector<1x2xf32>
    %c13 = arith.constant 13 : index
    %c0_39 = arith.constant 0 : index
    %81 = vector.load %arg10[%c13, %c0_39] : memref<56x2xf32, #tpu.memory_space<vmem>>, vector<1x2xf32>
    %82 = arith.maximumf %79, %81 : vector<1x2xf32>
    %83 = arith.addf %80, %81 : vector<1x2xf32>
    %cst_40 = arith.constant 2.500000e-01 : f32
    %84 = vector.broadcast %cst_40 : f32 to vector<1x2xf32>
    %85 = arith.mulf %83, %84 : vector<1x2xf32>
    %86 = vector.broadcast %9 : f32 to vector<1x2xf32>
    %87 = arith.mulf %86, %82 : vector<1x2xf32>
    %88 = vector.broadcast %10 : f32 to vector<1x2xf32>
    %89 = arith.mulf %88, %85 : vector<1x2xf32>
    %90 = arith.addf %87, %89 : vector<1x2xf32>
    %c7_41 = arith.constant 7 : index
    %c0_42 = arith.constant 0 : index
    %91 = vector.load %arg10[%c7_41, %c0_42] : memref<56x2xf32, #tpu.memory_space<vmem>>, vector<1x2xf32>
    %c8_43 = arith.constant 8 : index
    %c0_44 = arith.constant 0 : index
    %92 = vector.load %arg10[%c8_43, %c0_44] : memref<56x2xf32, #tpu.memory_space<vmem>>, vector<1x2xf32>
    %93 = arith.maximumf %91, %92 : vector<1x2xf32>
    %94 = arith.addf %91, %92 : vector<1x2xf32>
    %c14 = arith.constant 14 : index
    %c0_45 = arith.constant 0 : index
    %95 = vector.load %arg10[%c14, %c0_45] : memref<56x2xf32, #tpu.memory_space<vmem>>, vector<1x2xf32>
    %96 = arith.maximumf %93, %95 : vector<1x2xf32>
    %97 = arith.addf %94, %95 : vector<1x2xf32>
    %c15 = arith.constant 15 : index
    %c0_46 = arith.constant 0 : index
    %98 = vector.load %arg10[%c15, %c0_46] : memref<56x2xf32, #tpu.memory_space<vmem>>, vector<1x2xf32>
    %99 = arith.maximumf %96, %98 : vector<1x2xf32>
    %100 = arith.addf %97, %98 : vector<1x2xf32>
    %c21 = arith.constant 21 : index
    %c0_47 = arith.constant 0 : index
    %101 = vector.load %arg10[%c21, %c0_47] : memref<56x2xf32, #tpu.memory_space<vmem>>, vector<1x2xf32>
    %102 = arith.maximumf %99, %101 : vector<1x2xf32>
    %103 = arith.addf %100, %101 : vector<1x2xf32>
    %c22 = arith.constant 22 : index
    %c0_48 = arith.constant 0 : index
    %104 = vector.load %arg10[%c22, %c0_48] : memref<56x2xf32, #tpu.memory_space<vmem>>, vector<1x2xf32>
    %105 = arith.maximumf %102, %104 : vector<1x2xf32>
    %106 = arith.addf %103, %104 : vector<1x2xf32>
    %cst_49 = arith.constant 0.166666672 : f32
    %107 = vector.broadcast %cst_49 : f32 to vector<1x2xf32>
    %108 = arith.mulf %106, %107 : vector<1x2xf32>
    %109 = vector.broadcast %9 : f32 to vector<1x2xf32>
    %110 = arith.mulf %109, %105 : vector<1x2xf32>
    %111 = vector.broadcast %10 : f32 to vector<1x2xf32>
    %112 = arith.mulf %111, %108 : vector<1x2xf32>
    %113 = arith.addf %110, %112 : vector<1x2xf32>
    %c8_50 = arith.constant 8 : index
    %c0_51 = arith.constant 0 : index
    %114 = vector.load %arg10[%c8_50, %c0_51] : memref<56x2xf32, #tpu.memory_space<vmem>>, vector<1x2xf32>
    %c9_52 = arith.constant 9 : index
    %c0_53 = arith.constant 0 : index
    %115 = vector.load %arg10[%c9_52, %c0_53] : memref<56x2xf32, #tpu.memory_space<vmem>>, vector<1x2xf32>
    %116 = arith.maximumf %114, %115 : vector<1x2xf32>
    %117 = arith.addf %114, %115 : vector<1x2xf32>
    %c10_54 = arith.constant 10 : index
    %c0_55 = arith.constant 0 : index
    %118 = vector.load %arg10[%c10_54, %c0_55] : memref<56x2xf32, #tpu.memory_space<vmem>>, vector<1x2xf32>
    %119 = arith.maximumf %116, %118 : vector<1x2xf32>
    %120 = arith.addf %117, %118 : vector<1x2xf32>
    %c15_56 = arith.constant 15 : index
    %c0_57 = arith.constant 0 : index
    %121 = vector.load %arg10[%c15_56, %c0_57] : memref<56x2xf32, #tpu.memory_space<vmem>>, vector<1x2xf32>
    %122 = arith.maximumf %119, %121 : vector<1x2xf32>
    %123 = arith.addf %120, %121 : vector<1x2xf32>
    %c16 = arith.constant 16 : index
    %c0_58 = arith.constant 0 : index
    %124 = vector.load %arg10[%c16, %c0_58] : memref<56x2xf32, #tpu.memory_space<vmem>>, vector<1x2xf32>
    %125 = arith.maximumf %122, %124 : vector<1x2xf32>
    %126 = arith.addf %123, %124 : vector<1x2xf32>
    %c17 = arith.constant 17 : index
    %c0_59 = arith.constant 0 : index
    %127 = vector.load %arg10[%c17, %c0_59] : memref<56x2xf32, #tpu.memory_space<vmem>>, vector<1x2xf32>
    %128 = arith.maximumf %125, %127 : vector<1x2xf32>
    %129 = arith.addf %126, %127 : vector<1x2xf32>
    %c22_60 = arith.constant 22 : index
    %c0_61 = arith.constant 0 : index
    %130 = vector.load %arg10[%c22_60, %c0_61] : memref<56x2xf32, #tpu.memory_space<vmem>>, vector<1x2xf32>
    %131 = arith.maximumf %128, %130 : vector<1x2xf32>
    %132 = arith.addf %129, %130 : vector<1x2xf32>
    %c23 = arith.constant 23 : index
    %c0_62 = arith.constant 0 : index
    %133 = vector.load %arg10[%c23, %c0_62] : memref<56x2xf32, #tpu.memory_space<vmem>>, vector<1x2xf32>
    %134 = arith.maximumf %131, %133 : vector<1x2xf32>
    %135 = arith.addf %132, %133 : vector<1x2xf32>
    %c24 = arith.constant 24 : index
    %c0_63 = arith.constant 0 : index
    %136 = vector.load %arg10[%c24, %c0_63] : memref<56x2xf32, #tpu.memory_space<vmem>>, vector<1x2xf32>
    %137 = arith.maximumf %134, %136 : vector<1x2xf32>
    %138 = arith.addf %135, %136 : vector<1x2xf32>
    %cst_64 = arith.constant 0.111111112 : f32
    %139 = vector.broadcast %cst_64 : f32 to vector<1x2xf32>
    %140 = arith.mulf %138, %139 : vector<1x2xf32>
    %141 = vector.broadcast %9 : f32 to vector<1x2xf32>
    %142 = arith.mulf %141, %137 : vector<1x2xf32>
    %143 = vector.broadcast %10 : f32 to vector<1x2xf32>
    %144 = arith.mulf %143, %140 : vector<1x2xf32>
    %145 = arith.addf %142, %144 : vector<1x2xf32>
    %c10_65 = arith.constant 10 : index
    %c0_66 = arith.constant 0 : index
    %146 = vector.load %arg10[%c10_65, %c0_66] : memref<56x2xf32, #tpu.memory_space<vmem>>, vector<1x2xf32>
    %c11_67 = arith.constant 11 : index
    %c0_68 = arith.constant 0 : index
    %147 = vector.load %arg10[%c11_67, %c0_68] : memref<56x2xf32, #tpu.memory_space<vmem>>, vector<1x2xf32>
    %148 = arith.maximumf %146, %147 : vector<1x2xf32>
    %149 = arith.addf %146, %147 : vector<1x2xf32>
    %c12_69 = arith.constant 12 : index
    %c0_70 = arith.constant 0 : index
    %150 = vector.load %arg10[%c12_69, %c0_70] : memref<56x2xf32, #tpu.memory_space<vmem>>, vector<1x2xf32>
    %151 = arith.maximumf %148, %150 : vector<1x2xf32>
    %152 = arith.addf %149, %150 : vector<1x2xf32>
    %c17_71 = arith.constant 17 : index
    %c0_72 = arith.constant 0 : index
    %153 = vector.load %arg10[%c17_71, %c0_72] : memref<56x2xf32, #tpu.memory_space<vmem>>, vector<1x2xf32>
    %154 = arith.maximumf %151, %153 : vector<1x2xf32>
    %155 = arith.addf %152, %153 : vector<1x2xf32>
    %c18 = arith.constant 18 : index
    %c0_73 = arith.constant 0 : index
    %156 = vector.load %arg10[%c18, %c0_73] : memref<56x2xf32, #tpu.memory_space<vmem>>, vector<1x2xf32>
    %157 = arith.maximumf %154, %156 : vector<1x2xf32>
    %158 = arith.addf %155, %156 : vector<1x2xf32>
    %c19 = arith.constant 19 : index
    %c0_74 = arith.constant 0 : index
    %159 = vector.load %arg10[%c19, %c0_74] : memref<56x2xf32, #tpu.memory_space<vmem>>, vector<1x2xf32>
    %160 = arith.maximumf %157, %159 : vector<1x2xf32>
    %161 = arith.addf %158, %159 : vector<1x2xf32>
    %c24_75 = arith.constant 24 : index
    %c0_76 = arith.constant 0 : index
    %162 = vector.load %arg10[%c24_75, %c0_76] : memref<56x2xf32, #tpu.memory_space<vmem>>, vector<1x2xf32>
    %163 = arith.maximumf %160, %162 : vector<1x2xf32>
    %164 = arith.addf %161, %162 : vector<1x2xf32>
    %c25 = arith.constant 25 : index
    %c0_77 = arith.constant 0 : index
    %165 = vector.load %arg10[%c25, %c0_77] : memref<56x2xf32, #tpu.memory_space<vmem>>, vector<1x2xf32>
    %166 = arith.maximumf %163, %165 : vector<1x2xf32>
    %167 = arith.addf %164, %165 : vector<1x2xf32>
    %c26 = arith.constant 26 : index
    %c0_78 = arith.constant 0 : index
    %168 = vector.load %arg10[%c26, %c0_78] : memref<56x2xf32, #tpu.memory_space<vmem>>, vector<1x2xf32>
    %169 = arith.maximumf %166, %168 : vector<1x2xf32>
    %170 = arith.addf %167, %168 : vector<1x2xf32>
    %cst_79 = arith.constant 0.111111112 : f32
    %171 = vector.broadcast %cst_79 : f32 to vector<1x2xf32>
    %172 = arith.mulf %170, %171 : vector<1x2xf32>
    %173 = vector.broadcast %9 : f32 to vector<1x2xf32>
    %174 = arith.mulf %173, %169 : vector<1x2xf32>
    %175 = vector.broadcast %10 : f32 to vector<1x2xf32>
    %176 = arith.mulf %175, %172 : vector<1x2xf32>
    %177 = arith.addf %174, %176 : vector<1x2xf32>
    %c12_80 = arith.constant 12 : index
    %c0_81 = arith.constant 0 : index
    %178 = vector.load %arg10[%c12_80, %c0_81] : memref<56x2xf32, #tpu.memory_space<vmem>>, vector<1x2xf32>
    %c13_82 = arith.constant 13 : index
    %c0_83 = arith.constant 0 : index
    %179 = vector.load %arg10[%c13_82, %c0_83] : memref<56x2xf32, #tpu.memory_space<vmem>>, vector<1x2xf32>
    %180 = arith.maximumf %178, %179 : vector<1x2xf32>
    %181 = arith.addf %178, %179 : vector<1x2xf32>
    %c19_84 = arith.constant 19 : index
    %c0_85 = arith.constant 0 : index
    %182 = vector.load %arg10[%c19_84, %c0_85] : memref<56x2xf32, #tpu.memory_space<vmem>>, vector<1x2xf32>
    %183 = arith.maximumf %180, %182 : vector<1x2xf32>
    %184 = arith.addf %181, %182 : vector<1x2xf32>
    %c20 = arith.constant 20 : index
    %c0_86 = arith.constant 0 : index
    %185 = vector.load %arg10[%c20, %c0_86] : memref<56x2xf32, #tpu.memory_space<vmem>>, vector<1x2xf32>
    %186 = arith.maximumf %183, %185 : vector<1x2xf32>
    %187 = arith.addf %184, %185 : vector<1x2xf32>
    %c26_87 = arith.constant 26 : index
    %c0_88 = arith.constant 0 : index
    %188 = vector.load %arg10[%c26_87, %c0_88] : memref<56x2xf32, #tpu.memory_space<vmem>>, vector<1x2xf32>
    %189 = arith.maximumf %186, %188 : vector<1x2xf32>
    %190 = arith.addf %187, %188 : vector<1x2xf32>
    %c27 = arith.constant 27 : index
    %c0_89 = arith.constant 0 : index
    %191 = vector.load %arg10[%c27, %c0_89] : memref<56x2xf32, #tpu.memory_space<vmem>>, vector<1x2xf32>
    %192 = arith.maximumf %189, %191 : vector<1x2xf32>
    %193 = arith.addf %190, %191 : vector<1x2xf32>
    %cst_90 = arith.constant 0.166666672 : f32
    %194 = vector.broadcast %cst_90 : f32 to vector<1x2xf32>
    %195 = arith.mulf %193, %194 : vector<1x2xf32>
    %196 = vector.broadcast %9 : f32 to vector<1x2xf32>
    %197 = arith.mulf %196, %192 : vector<1x2xf32>
    %198 = vector.broadcast %10 : f32 to vector<1x2xf32>
    %199 = arith.mulf %198, %195 : vector<1x2xf32>
    %200 = arith.addf %197, %199 : vector<1x2xf32>
    %c21_91 = arith.constant 21 : index
    %c0_92 = arith.constant 0 : index
    %201 = vector.load %arg10[%c21_91, %c0_92] : memref<56x2xf32, #tpu.memory_space<vmem>>, vector<1x2xf32>
    %c22_93 = arith.constant 22 : index
    %c0_94 = arith.constant 0 : index
    %202 = vector.load %arg10[%c22_93, %c0_94] : memref<56x2xf32, #tpu.memory_space<vmem>>, vector<1x2xf32>
    %203 = arith.maximumf %201, %202 : vector<1x2xf32>
    %204 = arith.addf %201, %202 : vector<1x2xf32>
    %c28 = arith.constant 28 : index
    %c0_95 = arith.constant 0 : index
    %205 = vector.load %arg10[%c28, %c0_95] : memref<56x2xf32, #tpu.memory_space<vmem>>, vector<1x2xf32>
    %206 = arith.maximumf %203, %205 : vector<1x2xf32>
    %207 = arith.addf %204, %205 : vector<1x2xf32>
    %c29 = arith.constant 29 : index
    %c0_96 = arith.constant 0 : index
    %208 = vector.load %arg10[%c29, %c0_96] : memref<56x2xf32, #tpu.memory_space<vmem>>, vector<1x2xf32>
    %209 = arith.maximumf %206, %208 : vector<1x2xf32>
    %210 = arith.addf %207, %208 : vector<1x2xf32>
    %c35 = arith.constant 35 : index
    %c0_97 = arith.constant 0 : index
    %211 = vector.load %arg10[%c35, %c0_97] : memref<56x2xf32, #tpu.memory_space<vmem>>, vector<1x2xf32>
    %212 = arith.maximumf %209, %211 : vector<1x2xf32>
    %213 = arith.addf %210, %211 : vector<1x2xf32>
    %c36 = arith.constant 36 : index
    %c0_98 = arith.constant 0 : index
    %214 = vector.load %arg10[%c36, %c0_98] : memref<56x2xf32, #tpu.memory_space<vmem>>, vector<1x2xf32>
    %215 = arith.maximumf %212, %214 : vector<1x2xf32>
    %216 = arith.addf %213, %214 : vector<1x2xf32>
    %cst_99 = arith.constant 0.166666672 : f32
    %217 = vector.broadcast %cst_99 : f32 to vector<1x2xf32>
    %218 = arith.mulf %216, %217 : vector<1x2xf32>
    %219 = vector.broadcast %9 : f32 to vector<1x2xf32>
    %220 = arith.mulf %219, %215 : vector<1x2xf32>
    %221 = vector.broadcast %10 : f32 to vector<1x2xf32>
    %222 = arith.mulf %221, %218 : vector<1x2xf32>
    %223 = arith.addf %220, %222 : vector<1x2xf32>
    %c22_100 = arith.constant 22 : index
    %c0_101 = arith.constant 0 : index
    %224 = vector.load %arg10[%c22_100, %c0_101] : memref<56x2xf32, #tpu.memory_space<vmem>>, vector<1x2xf32>
    %c23_102 = arith.constant 23 : index
    %c0_103 = arith.constant 0 : index
    %225 = vector.load %arg10[%c23_102, %c0_103] : memref<56x2xf32, #tpu.memory_space<vmem>>, vector<1x2xf32>
    %226 = arith.maximumf %224, %225 : vector<1x2xf32>
    %227 = arith.addf %224, %225 : vector<1x2xf32>
    %c24_104 = arith.constant 24 : index
    %c0_105 = arith.constant 0 : index
    %228 = vector.load %arg10[%c24_104, %c0_105] : memref<56x2xf32, #tpu.memory_space<vmem>>, vector<1x2xf32>
    %229 = arith.maximumf %226, %228 : vector<1x2xf32>
    %230 = arith.addf %227, %228 : vector<1x2xf32>
    %c29_106 = arith.constant 29 : index
    %c0_107 = arith.constant 0 : index
    %231 = vector.load %arg10[%c29_106, %c0_107] : memref<56x2xf32, #tpu.memory_space<vmem>>, vector<1x2xf32>
    %232 = arith.maximumf %229, %231 : vector<1x2xf32>
    %233 = arith.addf %230, %231 : vector<1x2xf32>
    %c30 = arith.constant 30 : index
    %c0_108 = arith.constant 0 : index
    %234 = vector.load %arg10[%c30, %c0_108] : memref<56x2xf32, #tpu.memory_space<vmem>>, vector<1x2xf32>
    %235 = arith.maximumf %232, %234 : vector<1x2xf32>
    %236 = arith.addf %233, %234 : vector<1x2xf32>
    %c31 = arith.constant 31 : index
    %c0_109 = arith.constant 0 : index
    %237 = vector.load %arg10[%c31, %c0_109] : memref<56x2xf32, #tpu.memory_space<vmem>>, vector<1x2xf32>
    %238 = arith.maximumf %235, %237 : vector<1x2xf32>
    %239 = arith.addf %236, %237 : vector<1x2xf32>
    %c36_110 = arith.constant 36 : index
    %c0_111 = arith.constant 0 : index
    %240 = vector.load %arg10[%c36_110, %c0_111] : memref<56x2xf32, #tpu.memory_space<vmem>>, vector<1x2xf32>
    %241 = arith.maximumf %238, %240 : vector<1x2xf32>
    %242 = arith.addf %239, %240 : vector<1x2xf32>
    %c37 = arith.constant 37 : index
    %c0_112 = arith.constant 0 : index
    %243 = vector.load %arg10[%c37, %c0_112] : memref<56x2xf32, #tpu.memory_space<vmem>>, vector<1x2xf32>
    %244 = arith.maximumf %241, %243 : vector<1x2xf32>
    %245 = arith.addf %242, %243 : vector<1x2xf32>
    %c38 = arith.constant 38 : index
    %c0_113 = arith.constant 0 : index
    %246 = vector.load %arg10[%c38, %c0_113] : memref<56x2xf32, #tpu.memory_space<vmem>>, vector<1x2xf32>
    %247 = arith.maximumf %244, %246 : vector<1x2xf32>
    %248 = arith.addf %245, %246 : vector<1x2xf32>
    %cst_114 = arith.constant 0.111111112 : f32
    %249 = vector.broadcast %cst_114 : f32 to vector<1x2xf32>
    %250 = arith.mulf %248, %249 : vector<1x2xf32>
    %251 = vector.broadcast %9 : f32 to vector<1x2xf32>
    %252 = arith.mulf %251, %247 : vector<1x2xf32>
    %253 = vector.broadcast %10 : f32 to vector<1x2xf32>
    %254 = arith.mulf %253, %250 : vector<1x2xf32>
    %255 = arith.addf %252, %254 : vector<1x2xf32>
    %c24_115 = arith.constant 24 : index
    %c0_116 = arith.constant 0 : index
    %256 = vector.load %arg10[%c24_115, %c0_116] : memref<56x2xf32, #tpu.memory_space<vmem>>, vector<1x2xf32>
    %c25_117 = arith.constant 25 : index
    %c0_118 = arith.constant 0 : index
    %257 = vector.load %arg10[%c25_117, %c0_118] : memref<56x2xf32, #tpu.memory_space<vmem>>, vector<1x2xf32>
    %258 = arith.maximumf %256, %257 : vector<1x2xf32>
    %259 = arith.addf %256, %257 : vector<1x2xf32>
    %c26_119 = arith.constant 26 : index
    %c0_120 = arith.constant 0 : index
    %260 = vector.load %arg10[%c26_119, %c0_120] : memref<56x2xf32, #tpu.memory_space<vmem>>, vector<1x2xf32>
    %261 = arith.maximumf %258, %260 : vector<1x2xf32>
    %262 = arith.addf %259, %260 : vector<1x2xf32>
    %c31_121 = arith.constant 31 : index
    %c0_122 = arith.constant 0 : index
    %263 = vector.load %arg10[%c31_121, %c0_122] : memref<56x2xf32, #tpu.memory_space<vmem>>, vector<1x2xf32>
    %264 = arith.maximumf %261, %263 : vector<1x2xf32>
    %265 = arith.addf %262, %263 : vector<1x2xf32>
    %c32 = arith.constant 32 : index
    %c0_123 = arith.constant 0 : index
    %266 = vector.load %arg10[%c32, %c0_123] : memref<56x2xf32, #tpu.memory_space<vmem>>, vector<1x2xf32>
    %267 = arith.maximumf %264, %266 : vector<1x2xf32>
    %268 = arith.addf %265, %266 : vector<1x2xf32>
    %c33 = arith.constant 33 : index
    %c0_124 = arith.constant 0 : index
    %269 = vector.load %arg10[%c33, %c0_124] : memref<56x2xf32, #tpu.memory_space<vmem>>, vector<1x2xf32>
    %270 = arith.maximumf %267, %269 : vector<1x2xf32>
    %271 = arith.addf %268, %269 : vector<1x2xf32>
    %c38_125 = arith.constant 38 : index
    %c0_126 = arith.constant 0 : index
    %272 = vector.load %arg10[%c38_125, %c0_126] : memref<56x2xf32, #tpu.memory_space<vmem>>, vector<1x2xf32>
    %273 = arith.maximumf %270, %272 : vector<1x2xf32>
    %274 = arith.addf %271, %272 : vector<1x2xf32>
    %c39 = arith.constant 39 : index
    %c0_127 = arith.constant 0 : index
    %275 = vector.load %arg10[%c39, %c0_127] : memref<56x2xf32, #tpu.memory_space<vmem>>, vector<1x2xf32>
    %276 = arith.maximumf %273, %275 : vector<1x2xf32>
    %277 = arith.addf %274, %275 : vector<1x2xf32>
    %c40 = arith.constant 40 : index
    %c0_128 = arith.constant 0 : index
    %278 = vector.load %arg10[%c40, %c0_128] : memref<56x2xf32, #tpu.memory_space<vmem>>, vector<1x2xf32>
    %279 = arith.maximumf %276, %278 : vector<1x2xf32>
    %280 = arith.addf %277, %278 : vector<1x2xf32>
    %cst_129 = arith.constant 0.111111112 : f32
    %281 = vector.broadcast %cst_129 : f32 to vector<1x2xf32>
    %282 = arith.mulf %280, %281 : vector<1x2xf32>
    %283 = vector.broadcast %9 : f32 to vector<1x2xf32>
    %284 = arith.mulf %283, %279 : vector<1x2xf32>
    %285 = vector.broadcast %10 : f32 to vector<1x2xf32>
    %286 = arith.mulf %285, %282 : vector<1x2xf32>
    %287 = arith.addf %284, %286 : vector<1x2xf32>
    %c26_130 = arith.constant 26 : index
    %c0_131 = arith.constant 0 : index
    %288 = vector.load %arg10[%c26_130, %c0_131] : memref<56x2xf32, #tpu.memory_space<vmem>>, vector<1x2xf32>
    %c27_132 = arith.constant 27 : index
    %c0_133 = arith.constant 0 : index
    %289 = vector.load %arg10[%c27_132, %c0_133] : memref<56x2xf32, #tpu.memory_space<vmem>>, vector<1x2xf32>
    %290 = arith.maximumf %288, %289 : vector<1x2xf32>
    %291 = arith.addf %288, %289 : vector<1x2xf32>
    %c33_134 = arith.constant 33 : index
    %c0_135 = arith.constant 0 : index
    %292 = vector.load %arg10[%c33_134, %c0_135] : memref<56x2xf32, #tpu.memory_space<vmem>>, vector<1x2xf32>
    %293 = arith.maximumf %290, %292 : vector<1x2xf32>
    %294 = arith.addf %291, %292 : vector<1x2xf32>
    %c34 = arith.constant 34 : index
    %c0_136 = arith.constant 0 : index
    %295 = vector.load %arg10[%c34, %c0_136] : memref<56x2xf32, #tpu.memory_space<vmem>>, vector<1x2xf32>
    %296 = arith.maximumf %293, %295 : vector<1x2xf32>
    %297 = arith.addf %294, %295 : vector<1x2xf32>
    %c40_137 = arith.constant 40 : index
    %c0_138 = arith.constant 0 : index
    %298 = vector.load %arg10[%c40_137, %c0_138] : memref<56x2xf32, #tpu.memory_space<vmem>>, vector<1x2xf32>
    %299 = arith.maximumf %296, %298 : vector<1x2xf32>
    %300 = arith.addf %297, %298 : vector<1x2xf32>
    %c41 = arith.constant 41 : index
    %c0_139 = arith.constant 0 : index
    %301 = vector.load %arg10[%c41, %c0_139] : memref<56x2xf32, #tpu.memory_space<vmem>>, vector<1x2xf32>
    %302 = arith.maximumf %299, %301 : vector<1x2xf32>
    %303 = arith.addf %300, %301 : vector<1x2xf32>
    %cst_140 = arith.constant 0.166666672 : f32
    %304 = vector.broadcast %cst_140 : f32 to vector<1x2xf32>
    %305 = arith.mulf %303, %304 : vector<1x2xf32>
    %306 = vector.broadcast %9 : f32 to vector<1x2xf32>
    %307 = arith.mulf %306, %302 : vector<1x2xf32>
    %308 = vector.broadcast %10 : f32 to vector<1x2xf32>
    %309 = arith.mulf %308, %305 : vector<1x2xf32>
    %310 = arith.addf %307, %309 : vector<1x2xf32>
    %c35_141 = arith.constant 35 : index
    %c0_142 = arith.constant 0 : index
    %311 = vector.load %arg10[%c35_141, %c0_142] : memref<56x2xf32, #tpu.memory_space<vmem>>, vector<1x2xf32>
    %c36_143 = arith.constant 36 : index
    %c0_144 = arith.constant 0 : index
    %312 = vector.load %arg10[%c36_143, %c0_144] : memref<56x2xf32, #tpu.memory_space<vmem>>, vector<1x2xf32>
    %313 = arith.maximumf %311, %312 : vector<1x2xf32>
    %314 = arith.addf %311, %312 : vector<1x2xf32>
    %c42 = arith.constant 42 : index
    %c0_145 = arith.constant 0 : index
    %315 = vector.load %arg10[%c42, %c0_145] : memref<56x2xf32, #tpu.memory_space<vmem>>, vector<1x2xf32>
    %316 = arith.maximumf %313, %315 : vector<1x2xf32>
    %317 = arith.addf %314, %315 : vector<1x2xf32>
    %c43 = arith.constant 43 : index
    %c0_146 = arith.constant 0 : index
    %318 = vector.load %arg10[%c43, %c0_146] : memref<56x2xf32, #tpu.memory_space<vmem>>, vector<1x2xf32>
    %319 = arith.maximumf %316, %318 : vector<1x2xf32>
    %320 = arith.addf %317, %318 : vector<1x2xf32>
    %cst_147 = arith.constant 2.500000e-01 : f32
    %321 = vector.broadcast %cst_147 : f32 to vector<1x2xf32>
    %322 = arith.mulf %320, %321 : vector<1x2xf32>
    %323 = vector.broadcast %9 : f32 to vector<1x2xf32>
    %324 = arith.mulf %323, %319 : vector<1x2xf32>
    %325 = vector.broadcast %10 : f32 to vector<1x2xf32>
    %326 = arith.mulf %325, %322 : vector<1x2xf32>
    %327 = arith.addf %324, %326 : vector<1x2xf32>
    %c36_148 = arith.constant 36 : index
    %c0_149 = arith.constant 0 : index
    %328 = vector.load %arg10[%c36_148, %c0_149] : memref<56x2xf32, #tpu.memory_space<vmem>>, vector<1x2xf32>
    %c37_150 = arith.constant 37 : index
    %c0_151 = arith.constant 0 : index
    %329 = vector.load %arg10[%c37_150, %c0_151] : memref<56x2xf32, #tpu.memory_space<vmem>>, vector<1x2xf32>
    %330 = arith.maximumf %328, %329 : vector<1x2xf32>
    %331 = arith.addf %328, %329 : vector<1x2xf32>
    %c38_152 = arith.constant 38 : index
    %c0_153 = arith.constant 0 : index
    %332 = vector.load %arg10[%c38_152, %c0_153] : memref<56x2xf32, #tpu.memory_space<vmem>>, vector<1x2xf32>
    %333 = arith.maximumf %330, %332 : vector<1x2xf32>
    %334 = arith.addf %331, %332 : vector<1x2xf32>
    %c43_154 = arith.constant 43 : index
    %c0_155 = arith.constant 0 : index
    %335 = vector.load %arg10[%c43_154, %c0_155] : memref<56x2xf32, #tpu.memory_space<vmem>>, vector<1x2xf32>
    %336 = arith.maximumf %333, %335 : vector<1x2xf32>
    %337 = arith.addf %334, %335 : vector<1x2xf32>
    %c44 = arith.constant 44 : index
    %c0_156 = arith.constant 0 : index
    %338 = vector.load %arg10[%c44, %c0_156] : memref<56x2xf32, #tpu.memory_space<vmem>>, vector<1x2xf32>
    %339 = arith.maximumf %336, %338 : vector<1x2xf32>
    %340 = arith.addf %337, %338 : vector<1x2xf32>
    %c45 = arith.constant 45 : index
    %c0_157 = arith.constant 0 : index
    %341 = vector.load %arg10[%c45, %c0_157] : memref<56x2xf32, #tpu.memory_space<vmem>>, vector<1x2xf32>
    %342 = arith.maximumf %339, %341 : vector<1x2xf32>
    %343 = arith.addf %340, %341 : vector<1x2xf32>
    %cst_158 = arith.constant 0.166666672 : f32
    %344 = vector.broadcast %cst_158 : f32 to vector<1x2xf32>
    %345 = arith.mulf %343, %344 : vector<1x2xf32>
    %346 = vector.broadcast %9 : f32 to vector<1x2xf32>
    %347 = arith.mulf %346, %342 : vector<1x2xf32>
    %348 = vector.broadcast %10 : f32 to vector<1x2xf32>
    %349 = arith.mulf %348, %345 : vector<1x2xf32>
    %350 = arith.addf %347, %349 : vector<1x2xf32>
    %c38_159 = arith.constant 38 : index
    %c0_160 = arith.constant 0 : index
    %351 = vector.load %arg10[%c38_159, %c0_160] : memref<56x2xf32, #tpu.memory_space<vmem>>, vector<1x2xf32>
    %c39_161 = arith.constant 39 : index
    %c0_162 = arith.constant 0 : index
    %352 = vector.load %arg10[%c39_161, %c0_162] : memref<56x2xf32, #tpu.memory_space<vmem>>, vector<1x2xf32>
    %353 = arith.maximumf %351, %352 : vector<1x2xf32>
    %354 = arith.addf %351, %352 : vector<1x2xf32>
    %c40_163 = arith.constant 40 : index
    %c0_164 = arith.constant 0 : index
    %355 = vector.load %arg10[%c40_163, %c0_164] : memref<56x2xf32, #tpu.memory_space<vmem>>, vector<1x2xf32>
    %356 = arith.maximumf %353, %355 : vector<1x2xf32>
    %357 = arith.addf %354, %355 : vector<1x2xf32>
    %c45_165 = arith.constant 45 : index
    %c0_166 = arith.constant 0 : index
    %358 = vector.load %arg10[%c45_165, %c0_166] : memref<56x2xf32, #tpu.memory_space<vmem>>, vector<1x2xf32>
    %359 = arith.maximumf %356, %358 : vector<1x2xf32>
    %360 = arith.addf %357, %358 : vector<1x2xf32>
    %c46 = arith.constant 46 : index
    %c0_167 = arith.constant 0 : index
    %361 = vector.load %arg10[%c46, %c0_167] : memref<56x2xf32, #tpu.memory_space<vmem>>, vector<1x2xf32>
    %362 = arith.maximumf %359, %361 : vector<1x2xf32>
    %363 = arith.addf %360, %361 : vector<1x2xf32>
    %c47 = arith.constant 47 : index
    %c0_168 = arith.constant 0 : index
    %364 = vector.load %arg10[%c47, %c0_168] : memref<56x2xf32, #tpu.memory_space<vmem>>, vector<1x2xf32>
    %365 = arith.maximumf %362, %364 : vector<1x2xf32>
    %366 = arith.addf %363, %364 : vector<1x2xf32>
    %cst_169 = arith.constant 0.166666672 : f32
    %367 = vector.broadcast %cst_169 : f32 to vector<1x2xf32>
    %368 = arith.mulf %366, %367 : vector<1x2xf32>
    %369 = vector.broadcast %9 : f32 to vector<1x2xf32>
    %370 = arith.mulf %369, %365 : vector<1x2xf32>
    %371 = vector.broadcast %10 : f32 to vector<1x2xf32>
    %372 = arith.mulf %371, %368 : vector<1x2xf32>
    %373 = arith.addf %370, %372 : vector<1x2xf32>
    %c40_170 = arith.constant 40 : index
    %c0_171 = arith.constant 0 : index
    %374 = vector.load %arg10[%c40_170, %c0_171] : memref<56x2xf32, #tpu.memory_space<vmem>>, vector<1x2xf32>
    %c41_172 = arith.constant 41 : index
    %c0_173 = arith.constant 0 : index
    %375 = vector.load %arg10[%c41_172, %c0_173] : memref<56x2xf32, #tpu.memory_space<vmem>>, vector<1x2xf32>
    %376 = arith.maximumf %374, %375 : vector<1x2xf32>
    %377 = arith.addf %374, %375 : vector<1x2xf32>
    %c47_174 = arith.constant 47 : index
    %c0_175 = arith.constant 0 : index
    %378 = vector.load %arg10[%c47_174, %c0_175] : memref<56x2xf32, #tpu.memory_space<vmem>>, vector<1x2xf32>
    %379 = arith.maximumf %376, %378 : vector<1x2xf32>
    %380 = arith.addf %377, %378 : vector<1x2xf32>
    %c48 = arith.constant 48 : index
    %c0_176 = arith.constant 0 : index
    %381 = vector.load %arg10[%c48, %c0_176] : memref<56x2xf32, #tpu.memory_space<vmem>>, vector<1x2xf32>
    %382 = arith.maximumf %379, %381 : vector<1x2xf32>
    %383 = arith.addf %380, %381 : vector<1x2xf32>
    %cst_177 = arith.constant 2.500000e-01 : f32
    %384 = vector.broadcast %cst_177 : f32 to vector<1x2xf32>
    %385 = arith.mulf %383, %384 : vector<1x2xf32>
    %386 = vector.broadcast %9 : f32 to vector<1x2xf32>
    %387 = arith.mulf %386, %382 : vector<1x2xf32>
    %388 = vector.broadcast %10 : f32 to vector<1x2xf32>
    %389 = arith.mulf %388, %385 : vector<1x2xf32>
    %390 = arith.addf %387, %389 : vector<1x2xf32>
    %391 = tpu.concatenate %27, %50, %73, %90, %113, %145, %177, %200, %223, %255, %287, %310, %327, %350, %373, %390 in 1 : vector<1x2xf32>, vector<1x2xf32>, vector<1x2xf32>, vector<1x2xf32>, vector<1x2xf32>, vector<1x2xf32>, vector<1x2xf32>, vector<1x2xf32>, vector<1x2xf32>, vector<1x2xf32>, vector<1x2xf32>, vector<1x2xf32>, vector<1x2xf32>, vector<1x2xf32>, vector<1x2xf32>, vector<1x2xf32> -> vector<1x32xf32>
    %c0_178 = arith.constant 0 : index
    %c0_179 = arith.constant 0 : index
    %392 = vector.load %arg6[%c0_178, %c0_179] : memref<32x10xf32, #tpu.memory_space<vmem>>, vector<32x10xf32>
    %cst_180 = arith.constant dense<0.000000e+00> : vector<1x10xf32>
    %393 = tpu.matmul %391, %392, %cst_180 {dimension_numbers = #tpu.dot_dimension_numbers<[1], [0], [0], [1], [0, 0, 1, 1], [], []>} : vector<1x32xf32>, vector<32x10xf32>, vector<1x10xf32> -> vector<1x10xf32>
    %c0_181 = arith.constant 0 : index
    %c0_182 = arith.constant 0 : index
    %c0_183 = arith.constant 0 : index
    %394 = vector.load %arg5[%c0_181, %c0_182, %c0_183] : memref<1x1x10xf32, #tpu.memory_space<vmem>>, vector<1x1x10xf32>
    %395 = vector.shape_cast %394 : vector<1x1x10xf32> to vector<1x10xf32>
    %c0_184 = arith.constant 0 : index
    %c0_185 = arith.constant 0 : index
    %396 = vector.load %arg7[%c0_184, %c0_185] : memref<10x10xf32, #tpu.memory_space<vmem>>, vector<10x10xf32>
    %cst_186 = arith.constant dense<0.000000e+00> : vector<1x10xf32>
    %397 = tpu.matmul %395, %396, %cst_186 {dimension_numbers = #tpu.dot_dimension_numbers<[1], [0], [0], [1], [0, 0, 1, 1], [], []>} : vector<1x10xf32>, vector<10x10xf32>, vector<1x10xf32> -> vector<1x10xf32>
    %398 = arith.addf %393, %397 : vector<1x10xf32>
    %c0_187 = arith.constant 0 : index
    %c0_188 = arith.constant 0 : index
    %399 = vector.load %arg8[%c0_187, %c0_188] : memref<1x10xf32, #tpu.memory_space<vmem>>, vector<1x10xf32>
    %400 = arith.addf %398, %399 : vector<1x10xf32>
    %c0_189 = arith.constant 0 : index
    %c0_190 = arith.constant 0 : index
    %c0_191 = arith.constant 0 : index
    %401 = vector.load %arg9[%c0_189, %c0_190, %c0_191] : memref<1x1x10xf32, #tpu.memory_space<vmem>>, vector<1x1x10xf32>
    %402 = vector.shape_cast %401 : vector<1x1x10xf32> to vector<1x10xf32>
    %403 = vector.shape_cast %400 : vector<1x10xf32> to vector<1x1x10xf32>
    tpu.vector_store %arg9[%c0_189, %c0_190, %c0_191], %403 {strides = array<i32>} : memref<1x1x10xf32, #tpu.memory_space<vmem>>, vector<1x1x10xf32>,
    return
  }
  func.func @transform_0(%arg0: i32) -> (i32, i32) {
    %c0_i32 = arith.constant 0 : i32
    %c0_i32_0 = arith.constant 0 : i32
    return %arg0, %c0_i32 : i32, i32
  }
  func.func @transform_1(%arg0: i32) -> (i32, i32) {
    %c0_i32 = arith.constant 0 : i32
    %c0_i32_0 = arith.constant 0 : i32
    %c0_i32_1 = arith.constant 0 : i32
    return %c0_i32, %c0_i32_0 : i32, i32
  }
  func.func @transform_2(%arg0: i32) -> (i32, i32) {
    %c0_i32 = arith.constant 0 : i32
    %c0_i32_0 = arith.constant 0 : i32
    %c0_i32_1 = arith.constant 0 : i32
    return %c0_i32, %c0_i32_0 : i32, i32
  }
  func.func @transform_3(%arg0: i32) -> i32 {
    %c0_i32 = arith.constant 0 : i32
    %c0_i32_0 = arith.constant 0 : i32
    return %c0_i32 : i32
  }
  func.func @transform_4(%arg0: i32) -> (i32, i32, i32) {
    %c0_i32 = arith.constant 0 : i32
    %c0_i32_0 = arith.constant 0 : i32
    %c0_i32_1 = arith.constant 0 : i32
    return %arg0, %c0_i32, %c0_i32_0 : i32, i32, i32
  }
  func.func @transform_5(%arg0: i32) -> (i32, i32) {
    %c0_i32 = arith.constant 0 : i32
    %c0_i32_0 = arith.constant 0 : i32
    %c0_i32_1 = arith.constant 0 : i32
    return %c0_i32, %c0_i32_0 : i32, i32
  }
  func.func @transform_6(%arg0: i32) -> (i32, i32) {
    %c0_i32 = arith.constant 0 : i32
    %c0_i32_0 = arith.constant 0 : i32
    %c0_i32_1 = arith.constant 0 : i32
    return %c0_i32, %c0_i32_0 : i32, i32
  }
  func.func @transform_7(%arg0: i32) -> (i32, i32) {
    %c0_i32 = arith.constant 0 : i32
    %c0_i32_0 = arith.constant 0 : i32
    %c0_i32_1 = arith.constant 0 : i32
    return %c0_i32, %c0_i32_0 : i32, i32
  }
  func.func @transform_8(%arg0: i32) -> (i32, i32, i32) {
    %c0_i32 = arith.constant 0 : i32
    %c0_i32_0 = arith.constant 0 : i32
    %c0_i32_1 = arith.constant 0 : i32
    return %arg0, %c0_i32, %c0_i32_0 : i32, i32, i32
  }
}

</mosaic_0001>

<llo_original>
// kernel: tpu_custom_call.1
$region0: #{tpu_custom_call.1}
  #allocation0 [shape = 'u32[]', space=smem, size = 0x4, offset = 0x4, fixed_abs, tag = 'smem constant byte address 0x4 - core index']
  #allocation1 [shape = 'u32[72,128]{1,0:T(1,128)}', space=vmem, size = 0x9000, scoped, tag = 'internal scratch']
  #allocation2 [shape = 'f32[56,2]{1,0:T(8,128)}', space=vmem, size = 0x7000, scoped, tag = 'scratch operand']
  #allocation3 [shape = 'f32[1]{0:T(128)S(6)}', space=smem, size = 0x200, scoped, tag = 'scoped memory for tpu_custom_call.1']
  %s0 = inlined_call_operand.vmem [shape: bf16[112,36], index: 0, kind: input, shape index: {}]
  %s1 = inlined_call_operand.vmem [shape: bf16[36,2], index: 1, kind: input, shape index: {}]
  %s2 = inlined_call_operand.vmem [shape: f32[1,2], index: 2, kind: input, shape index: {}]
  %s3 = inlined_call_operand.<no memory space> [shape: f32[1], index: 3, kind: input, shape index: {}]
  %s4 = inlined_call_operand.vmem [shape: f32[2,1,10], index: 4, kind: input, shape index: {}]
  %s5 = inlined_call_operand.vmem [shape: f32[32,10], index: 5, kind: input, shape index: {}]
  %s6 = inlined_call_operand.vmem [shape: f32[10,10], index: 6, kind: input, shape index: {}]
  %s7 = inlined_call_operand.vmem [shape: f32[1,10], index: 7, kind: input, shape index: {}]
  %s8 = inlined_call_operand.hbm [shape: f32[2,1,10], index: 8, kind: output, shape index: {}]
  %s9 = sld [smem:[#allocation0]]
  $region65: #{tpu_custom_call.1} parent=0
    _
  %s11 = ssub.s32 1, %s9
  %s12 = scalar_select 0, %s11, %s9
  %13 = sst [smem:[#allocation3]] %s3
  $region1: #{tpu_custom_call.1} parent=0
    #allocation4 [shape = 'u8[1024]{0}', space=vmem, size = 0x400, scoped, tag = 'output window, operand 0']
    #allocation5 [shape = 's32[2]{0}', space=sflag, size = 0x8, scoped, tag = 'scoped memory for tpu_custom_call.1']
    %14 = vsyncpa [#allocation5], 0
    %s15 = scalar_lea.sflag [#allocation5], 1
    %16 = vsyncpa %s15, 0
    loop: start=0, step=1, limit=4
    $region2: #{tpu_custom_call.1} parent=1 // loop_pre_header
      _
    $region3: #{tpu_custom_call.1} parent=1 // loop_header
      %s18 = sphi 0, %s22
      %p19 = scmp.ge.s32.totalorder %s18, 4
      %s28 = sphi 0, %s30
      %s31 = sphi 0, %s28
      %s32 = sphi 0, %s31
      %s48 = sphi 0, %s32
      %s52 = sphi 0, %s52
      %s54 = sphi 0, %s52
      %s55 = sphi 0, %s54
      %s69 = sphi 0, %s55
      %s73 = sphi 0, %s73
      %s75 = sphi 0, %s73
      %s76 = sphi 0, %s75
      %s90 = sphi 0, %s76
      %s94 = sphi 0, %s94
      %s96 = sphi 0, %s94
      %s97 = sphi 0, %s96
      %s111 = sphi 0, %s97
      %s117 = sphi 0, %s119
      %s120 = sphi 0, %s117
      %s121 = sphi 0, %s120
      %s137 = sphi 0, %s121
      %s141 = sphi 0, %s141
      %s143 = sphi 0, %s141
      %s144 = sphi 0, %s143
      %s158 = sphi 0, %s144
      %s162 = sphi 0, %s162
      %s164 = sphi 0, %s162
      %s165 = sphi 0, %s164
      %s179 = sphi 0, %s165
      %s183 = sphi 0, %s183
      %s185 = sphi 0, %s183
      %s186 = sphi 0, %s185
      %s200 = sphi 0, %s186
      %s206 = sphi 0, %s208
      %s209 = sphi 0, %s206
      %s210 = sphi 0, %s209
      %s226 = sphi 0, %s210
    $region4: #{tpu_custom_call.1} parent=1 // loop_header_branch
      %21 = sbr.rel (%p19) target = $region8
    $region5: #{tpu_custom_call.1} parent=1 // loop_body
      %s23 = ssub.s32 %s18, 1
      %s24 = ssub.s32 %s18, 2
      %s25 = sadd.s32 %s18, 1
      %s26 = ssub.s32 %s18, %s25
      %p27 = scmp.eq.s32.totalorder %s26, 0
      %s29 = sadd.s32 %s28, 1
      %s30 = scalar_select %p27, %s28, %s29
      %p33 = pneg %p27
      %p34 = scmp.eq.s32.totalorder %s18, 1
      %p35 = por %p33, %p34
      %p36 = scmp.ne.s32.totalorder %s28, %s31
      %p37 = scmp.eq.s32.totalorder %s18, 0
      %p38 = por %p36, %p37
      %p39 = scmp.ne.s32.totalorder %s28, %s31
      %p40 = scmp.eq.s32.totalorder %s23, 1
      %p41 = por %p39, %p40
      %p42 = scmp.ne.s32.totalorder %s31, %s32
      %p43 = scmp.eq.s32.totalorder %s23, 0
      %p44 = por %p42, %p43
      %p45 = scmp.ne.s32.totalorder %s31, %s32
      %p46 = scmp.eq.s32.totalorder %s24, 1
      %p47 = por %p45, %p46
      %p49 = scmp.ne.s32.totalorder %s32, %s48
      %p50 = scmp.eq.s32.totalorder %s24, 0
      %p51 = por %p49, %p50
      %s53 = sadd.s32 %s52, 1
      %p56 = scmp.eq.s32.totalorder %s18, 1
      %p57 = scmp.ne.s32.totalorder %s52, %s54
      %p58 = scmp.eq.s32.totalorder %s18, 0
      %p59 = por %p57, %p58
      %p60 = scmp.ne.s32.totalorder %s52, %s54
      %p61 = scmp.eq.s32.totalorder %s23, 1
      %p62 = por %p60, %p61
      %p63 = scmp.ne.s32.totalorder %s54, %s55
      %p64 = scmp.eq.s32.totalorder %s23, 0
      %p65 = por %p63, %p64
      %p66 = scmp.ne.s32.totalorder %s54, %s55
      %p67 = scmp.eq.s32.totalorder %s24, 1
      %p68 = por %p66, %p67
      %p70 = scmp.ne.s32.totalorder %s55, %s69
      %p71 = scmp.eq.s32.totalorder %s24, 0
      %p72 = por %p70, %p71
      %s74 = sadd.s32 %s73, 1
      %p77 = scmp.eq.s32.totalorder %s18, 1
      %p78 = scmp.ne.s32.totalorder %s73, %s75
      %p79 = scmp.eq.s32.totalorder %s18, 0
      %p80 = por %p78, %p79
      %p81 = scmp.ne.s32.totalorder %s73, %s75
      %p82 = scmp.eq.s32.totalorder %s23, 1
      %p83 = por %p81, %p82
      %p84 = scmp.ne.s32.totalorder %s75, %s76
      %p85 = scmp.eq.s32.totalorder %s23, 0
      %p86 = por %p84, %p85
      %p87 = scmp.ne.s32.totalorder %s75, %s76
      %p88 = scmp.eq.s32.totalorder %s24, 1
      %p89 = por %p87, %p88
      %p91 = scmp.ne.s32.totalorder %s76, %s90
      %p92 = scmp.eq.s32.totalorder %s24, 0
      %p93 = por %p91, %p92
      %s95 = sadd.s32 %s94, 1
      %p98 = scmp.eq.s32.totalorder %s18, 1
      %p99 = scmp.ne.s32.totalorder %s94, %s96
      %p100 = scmp.eq.s32.totalorder %s18, 0
      %p101 = por %p99, %p100
      %p102 = scmp.ne.s32.totalorder %s94, %s96
      %p103 = scmp.eq.s32.totalorder %s23, 1
      %p104 = por %p102, %p103
      %p105 = scmp.ne.s32.totalorder %s96, %s97
      %p106 = scmp.eq.s32.totalorder %s23, 0
      %p107 = por %p105, %p106
      %p108 = scmp.ne.s32.totalorder %s96, %s97
      %p109 = scmp.eq.s32.totalorder %s24, 1
      %p110 = por %p108, %p109
      %p112 = scmp.ne.s32.totalorder %s97, %s111
      %p113 = scmp.eq.s32.totalorder %s24, 0
      %p114 = por %p112, %p113
      %s115 = ssub.s32 %s18, %s25
      %p116 = scmp.eq.s32.totalorder %s115, 0
      %s118 = sadd.s32 %s117, 1
      %s119 = scalar_select %p116, %s117, %s118
      %p122 = pneg %p116
      %p123 = scmp.eq.s32.totalorder %s18, 1
      %p124 = por %p122, %p123
      %p125 = scmp.ne.s32.totalorder %s117, %s120
      %p126 = scmp.eq.s32.totalorder %s18, 0
      %p127 = por %p125, %p126
      %p128 = scmp.ne.s32.totalorder %s117, %s120
      %p129 = scmp.eq.s32.totalorder %s23, 1
      %p130 = por %p128, %p129
      %p131 = scmp.ne.s32.totalorder %s120, %s121
      %p132 = scmp.eq.s32.totalorder %s23, 0
      %p133 = por %p131, %p132
      %p134 = scmp.ne.s32.totalorder %s120, %s121
      %p135 = scmp.eq.s32.totalorder %s24, 1
      %p136 = por %p134, %p135
      %p138 = scmp.ne.s32.totalorder %s121, %s137
      %p139 = scmp.eq.s32.totalorder %s24, 0
      %p140 = por %p138, %p139
      %s142 = sadd.s32 %s141, 1
      %p145 = scmp.eq.s32.totalorder %s18, 1
      %p146 = scmp.ne.s32.totalorder %s141, %s143
      %p147 = scmp.eq.s32.totalorder %s18, 0
      %p148 = por %p146, %p147
      %p149 = scmp.ne.s32.totalorder %s141, %s143
      %p150 = scmp.eq.s32.totalorder %s23, 1
      %p151 = por %p149, %p150
      %p152 = scmp.ne.s32.totalorder %s143, %s144
      %p153 = scmp.eq.s32.totalorder %s23, 0
      %p154 = por %p152, %p153
      %p155 = scmp.ne.s32.totalorder %s143, %s144
      %p156 = scmp.eq.s32.totalorder %s24, 1
      %p157 = por %p155, %p156
      %p159 = scmp.ne.s32.totalorder %s144, %s158
      %p160 = scmp.eq.s32.totalorder %s24, 0
      %p161 = por %p159, %p160
      %s163 = sadd.s32 %s162, 1
      %p166 = scmp.eq.s32.totalorder %s18, 1
      %p167 = scmp.ne.s32.totalorder %s162, %s164
      %p168 = scmp.eq.s32.totalorder %s18, 0
      %p169 = por %p167, %p168
      %p170 = scmp.ne.s32.totalorder %s162, %s164
      %p171 = scmp.eq.s32.totalorder %s23, 1
      %p172 = por %p170, %p171
      %p173 = scmp.ne.s32.totalorder %s164, %s165
      %p174 = scmp.eq.s32.totalorder %s23, 0
      %p175 = por %p173, %p174
      %p176 = scmp.ne.s32.totalorder %s164, %s165
      %p177 = scmp.eq.s32.totalorder %s24, 1
      %p178 = por %p176, %p177
      %p180 = scmp.ne.s32.totalorder %s165, %s179
      %p181 = scmp.eq.s32.totalorder %s24, 0
      %p182 = por %p180, %p181
      %s184 = sadd.s32 %s183, 1
      %p187 = scmp.eq.s32.totalorder %s18, 1
      %p188 = scmp.ne.s32.totalorder %s183, %s185
      %p189 = scmp.eq.s32.totalorder %s18, 0
      %p190 = por %p188, %p189
      %p191 = scmp.ne.s32.totalorder %s183, %s185
      %p192 = scmp.eq.s32.totalorder %s23, 1
      %p193 = por %p191, %p192
      %p194 = scmp.ne.s32.totalorder %s185, %s186
      %p195 = scmp.eq.s32.totalorder %s23, 0
      %p196 = por %p194, %p195
      %p197 = scmp.ne.s32.totalorder %s185, %s186
      %p198 = scmp.eq.s32.totalorder %s24, 1
      %p199 = por %p197, %p198
      %p201 = scmp.ne.s32.totalorder %s186, %s200
      %p202 = scmp.eq.s32.totalorder %s24, 0
      %p203 = por %p201, %p202
      %s204 = ssub.s32 %s18, %s25
      %p205 = scmp.eq.s32.totalorder %s204, 0
      %s207 = sadd.s32 %s206, 1
      %s208 = scalar_select %p205, %s206, %s207
      %p211 = pneg %p205
      %p212 = scmp.eq.s32.totalorder %s18, 1
      %p213 = por %p211, %p212
      %p214 = scmp.ne.s32.totalorder %s206, %s209
      %p215 = scmp.eq.s32.totalorder %s18, 0
      %p216 = por %p214, %p215
      %p217 = scmp.ne.s32.totalorder %s206, %s209
      %p218 = scmp.eq.s32.totalorder %s23, 1
      %p219 = por %p217, %p218
      %p220 = scmp.ne.s32.totalorder %s209, %s210
      %p221 = scmp.eq.s32.totalorder %s23, 0
      %p222 = por %p220, %p221
      %p223 = scmp.ne.s32.totalorder %s209, %s210
      %p224 = scmp.eq.s32.totalorder %s24, 1
      %p225 = por %p223, %p224
      %p227 = scmp.ne.s32.totalorder %s210, %s226
      %p228 = scmp.eq.s32.totalorder %s24, 0
      %p229 = por %p227, %p228
      %p230 = scmp.le.s32.totalorder 1, %s18
      %p231 = scmp.lt.s32.totalorder %s18, 3
      %p232 = pnand %p230, %p231
      %p233 = pneg %p232
      // Predicated region
      $region9: #{tpu_custom_call.1} parent=5 // pred_check
        _
      $region10: #{tpu_custom_call.1} parent=5 // pred_check_branch
        %235 = sbr.rel (%p232) target = $region12
      $region11: #{tpu_custom_call.1} parent=5 // pred_region
        %s236 = ssub.s32 %s18, 1
        // Predicated region
        $region13: #{tpu_custom_call.1} parent=11 // pred_check
          %p237 = pneg %p65
        $region14: #{tpu_custom_call.1} parent=11 // pred_check_branch
          %239 = sbr.rel (%p237) target = $region16
        $region15: #{tpu_custom_call.1} parent=11 // pred_region
          _
        $region16: #{tpu_custom_call.1} parent=11 // pred_fallthru
          _
        // Predicated region
        $region17: #{tpu_custom_call.1} parent=11 // pred_check
          %p240 = pneg %p86
        $region18: #{tpu_custom_call.1} parent=11 // pred_check_branch
          %242 = sbr.rel (%p240) target = $region20
        $region19: #{tpu_custom_call.1} parent=11 // pred_region
          _
        $region20: #{tpu_custom_call.1} parent=11 // pred_fallthru
          _
        // Predicated region
        $region21: #{tpu_custom_call.1} parent=11 // pred_check
          %p243 = pneg %p107
        $region22: #{tpu_custom_call.1} parent=11 // pred_check_branch
          %245 = sbr.rel (%p243) target = $region24
        $region23: #{tpu_custom_call.1} parent=11 // pred_region
          _
        $region24: #{tpu_custom_call.1} parent=11 // pred_fallthru
          _
        // Predicated region
        $region25: #{tpu_custom_call.1} parent=11 // pred_check
          %p246 = pneg %p154
        $region26: #{tpu_custom_call.1} parent=11 // pred_check_branch
          %248 = sbr.rel (%p246) target = $region28
        $region27: #{tpu_custom_call.1} parent=11 // pred_region
          _
        $region28: #{tpu_custom_call.1} parent=11 // pred_fallthru
          _
        // Predicated region
        $region29: #{tpu_custom_call.1} parent=11 // pred_check
          %p249 = pneg %p175
        $region30: #{tpu_custom_call.1} parent=11 // pred_check_branch
          %251 = sbr.rel (%p249) target = $region32
        $region31: #{tpu_custom_call.1} parent=11 // pred_region
          _
        $region32: #{tpu_custom_call.1} parent=11 // pred_fallthru
          _
        // Predicated region
        $region33: #{tpu_custom_call.1} parent=11 // pred_check
          %p252 = pneg %p196
        $region34: #{tpu_custom_call.1} parent=11 // pred_check_branch
          %254 = sbr.rel (%p252) target = $region36
        $region35: #{tpu_custom_call.1} parent=11 // pred_region
          _
        $region36: #{tpu_custom_call.1} parent=11 // pred_fallthru
          _
      $region12: #{tpu_custom_call.1} parent=5 // pred_fallthru
        _
      %p255 = scmp.lt.s32.totalorder %s18, 2
      // Predicated region
      $region37: #{tpu_custom_call.1} parent=5 // pred_check
        %p256 = pneg %p255
      $region38: #{tpu_custom_call.1} parent=5 // pred_check_branch
        %258 = sbr.rel (%p256) target = $region40
      $region39: #{tpu_custom_call.1} parent=5 // pred_region
        // Predicated region
        $region41: #{tpu_custom_call.1} parent=39 // pred_check
          %p259 = pneg %p38
        $region42: #{tpu_custom_call.1} parent=39 // pred_check_branch
          %261 = sbr.rel (%p259) target = $region44
        $region43: #{tpu_custom_call.1} parent=39 // pred_region
          %s262 = smul.u32 7, %s18
          %p263 = scmp.lt.s32.totalorder %s262, 13
          %s264 = scalar_select %p263, %s262, 13
          %s265 = smul.addr %s264, 4
          %s266 = scalar_lea.vmem %s0, %s265
          %s267 = smul.u32 7, %s18
        $region44: #{tpu_custom_call.1} parent=39 // pred_fallthru
          _
        // Predicated region
        $region45: #{tpu_custom_call.1} parent=39 // pred_check
          %p268 = pneg %p127
        $region46: #{tpu_custom_call.1} parent=39 // pred_check_branch
          %270 = sbr.rel (%p268) target = $region48
        $region47: #{tpu_custom_call.1} parent=39 // pred_region
          %p271 = scmp.lt.s32.totalorder %s18, 1
          %s272 = scalar_select %p271, %s18, 1
          %s273 = scalar_lea.vmem %s4, %s272
        $region48: #{tpu_custom_call.1} parent=39 // pred_fallthru
          _
      $region40: #{tpu_custom_call.1} parent=5 // pred_fallthru
        _
      %p274 = scmp.le.s32.totalorder 1, %s18
      %p275 = scmp.lt.s32.totalorder %s18, 3
      %p276 = pnand %p274, %p275
      %p277 = pneg %p276
      // Predicated region
      $region49: #{tpu_custom_call.1} parent=5 // pred_check
        _
      $region50: #{tpu_custom_call.1} parent=5 // pred_check_branch
        %279 = sbr.rel (%p276) target = $region52
      $region51: #{tpu_custom_call.1} parent=5 // pred_region
        %s280 = ssub.s32 %s18, 1
        %s281 = smul.u32 7, %s23
        %p282 = scmp.lt.s32.totalorder %s281, 13
        %s283 = scalar_select %p282, %s281, 13
        %s284 = smul.addr %s283, 4
        %s285 = scalar_lea.vmem %s0, %s284
        %p286 = pneg %p44
        %p287 = pneg %p41
        %p288 = pneg %p65
        %p289 = pneg %p62
        %p290 = pneg %p86
        %p291 = pneg %p83
        %p292 = pneg %p107
        %p293 = pneg %p104
        %p294 = scmp.lt.s32.totalorder %s23, 1
        %s295 = scalar_select %p294, %s23, 1
        %s296 = scalar_lea.vmem %s4, %s295
        %p297 = pneg %p133
        %p298 = pneg %p130
        %p299 = pneg %p154
        %p300 = pneg %p151
        %p301 = pneg %p175
        %p302 = pneg %p172
        %p303 = pneg %p196
        %p304 = pneg %p193
        %p305 = pneg %p222
        %p306 = pneg %p219
        %s307 = sand.u32 %s209, 1
        %s308 = scalar_lea.sflag [#allocation5], %s307
        %s309 = sand.u32 %s209, 1
        %s310 = scalar_lea.vmem [#allocation4], %s309
        %s311 = smul.u32 7, %s23
        %p312 = scmp.lt.s32.totalorder %s311, 13
        %s313 = scalar_select %p312, %s311, 13
        %s314 = smul.addr %s313, 4
        %s315 = scalar_lea.vmem %s0, %s314
        %s316 = smul.u32 7, %s23
        %p317 = scmp.lt.s32.totalorder %s23, 1
        %s318 = scalar_select %p317, %s23, 1
        %s319 = scalar_lea.vmem %s4, %s318
        %v321 = vld [vmem:[%s315] sm:$0xf]
        %v322 = vld [vmem:[%s315 + $0x4] sm:$0xf]
        %v323 = vld [vmem:[%s315 + $0x8] sm:$0xf]
        %v324 = vld [vmem:[%s315 + $0xc] sm:$0xf]
        %v325 = vld [vmem:[%s315 + $0x10] sm:$0xf]
        %v326 = vld [vmem:[%s315 + $0x14] sm:$0xf]
        %v327 = vld [vmem:[%s315 + $0x18] sm:$0xf]
        %v328 = vunpack.c.l.bf16 %v321
        %v329 = vunpack.c.l.bf16 %v322
        %v330 = vunpack.c.l.bf16 %v323
        %v331 = vunpack.c.l.bf16 %v324
        %v332 = vunpack.c.l.bf16 %v325
        %v333 = vunpack.c.l.bf16 %v326
        %v334 = vunpack.c.l.bf16 %v327
        %v335 = vmax.f32 %v328, 0.0
        %v336 = vmax.f32 %v329, 0.0
        %v337 = vmax.f32 %v330, 0.0
        %v338 = vmax.f32 %v331, 0.0
        %v339 = vmax.f32 %v332, 0.0
        %v340 = vmax.f32 %v333, 0.0
        %v341 = vmax.f32 %v334, 0.0
        %v342 = vpack.c.bf16 %v336, %v335
        %v343 = vpack.c.bf16 %v338, %v337
        %v344 = vpack.c.bf16 %v340, %v339
        %v345 = vpack.c.bf16 %v341, %v341
        %v346 = vld [vmem:[%s1] sm:$0xf]
        %v347 = vld [vmem:[%s1 + $0x4] sm:$0xf]
        %v348 = vld [vmem:[%s1 + $0x8] sm:$0xf]
        %v349 = vld [vmem:[%s1 + $0xc] sm:$0xf]
        %v350 = vld [vmem:[%s1 + $0x10] sm:$0x3]
        %v351 = vld [vmem:[%s2] sm:$0x1]
        %v353 = vperm.slane %v351, 0
        %v360 = vunpack.c.l.b16 %v346
        %v361 = vunpack.c.l.b16 %v347
        %v362 = vunpack.c.l.b16 %v348
        %v363 = vunpack.c.l.b16 %v349
        %v364 = vunpack.c.l.b16 %v350
        %v365 = vpack.c.b16 %v361, %v360
        %v366 = vpack.c.b16 %v363, %v362
        %v367 = vpack.c.b16 %v364, %v364
        %vm370 = vcmask 293888
        %v372 = vsel %vm370, %v342, 0
        %v375 = vsel %vm370, %v343, 0
        %v378 = vsel %vm370, %v344, 0
        %v381 = vsel %vm370, %v345, 0
        %vm383 = vcmask 1041408
        %v385 = vsel %vm383, %v367, 0
        %387 = vmatpush.bf16.msra.mxu0 0
        %388 = vmatpush.bf16.msra.mxu0 0
        %389 = vmatpush.bf16.msra.mxu0 0
        %390 = vmatpush.bf16.msra.mxu0 0
        %391 = vmatpush.bf16.msra.mxu0 0
        %392 = vmatpush.bf16.msra.mxu0 %v385
        %393 = vmatpush.bf16.msra.mxu0 %v366
        %394 = vmatpush.bf16.msra.mxu0 %v365
        %395 = vmatmul.bf16.gmra.mxu0 %v372
        %v396 = vpop.f32.mrf.mxu0
        %v397 = vadd.f32 %v353, %v396
        %v398 = vpop.f32.mrf.mxu0
        %v399 = vadd.f32 %v353, %v398
        %400 = vmatmul.bf16.gmra.mxu0 %v375
        %v401 = vpop.f32.mrf.mxu0
        %v402 = vadd.f32 %v353, %v401
        %v403 = vpop.f32.mrf.mxu0
        %v404 = vadd.f32 %v353, %v403
        %405 = vmatmul.bf16.gmra.mxu0 %v378
        %v406 = vpop.f32.mrf.mxu0
        %v407 = vadd.f32 %v353, %v406
        %v408 = vpop.f32.mrf.mxu0
        %v409 = vadd.f32 %v353, %v408
        %410 = vmatmul.bf16.gmra.mxu0 %v381
        %v411 = vpop.f32.mrf.mxu0
        %v412 = vadd.f32 %v353, %v411
        %v413 = vpop.f32.mrf.mxu0
        %414 = vdwg.mxu0
        %vm415 = vcmask 15360
        %416 = vst.msk [vmem:[#allocation2] sm:$0xff] %vm415, %v397
        %417 = vst.msk [vmem:[#allocation2 + $0x8] sm:$0xff] %vm415, %v399
        %418 = vst.msk [vmem:[#allocation2 + $0x10] sm:$0xff] %vm415, %v402
        %419 = vst.msk [vmem:[#allocation2 + $0x18] sm:$0xff] %vm415, %v404
        %420 = vst.msk [vmem:[#allocation2 + $0x20] sm:$0xff] %vm415, %v407
        %421 = vst.msk [vmem:[#allocation2 + $0x28] sm:$0xff] %vm415, %v409
        %422 = vst.msk [vmem:[#allocation2 + $0x30] sm:$0xff] %vm415, %v412
        %s423 = sld [smem:[#allocation3]]
        %s424 = ssub.f32 1.0, %s423
        %v425 = vld [vmem:[#allocation2] sm:$0x1]
        %v426 = vld [vmem:[#allocation2 + $0x1] sm:$0x1]
        %v427 = vmax.f32 %v425, %v426
        %v428 = vadd.f32 %v425, %v426
        %v429 = vld [vmem:[#allocation2 + $0x7] sm:$0x1]
        %v430 = vmax.f32 %v427, %v429
        %v431 = vadd.f32 %v428, %v429
        %v432 = vld [vmem:[#allocation2 + $0x8] sm:$0x1]
        %v433 = vmax.f32 %v430, %v432
        %v434 = vadd.f32 %v431, %v432
        %v435 = vmul.f32 %v434, 0.25
        %v436 = vstv %s423
        %v437 = vmul.f32 %v436, %v433
        %v438 = vstv %s424
        %v439 = vmul.f32 %v438, %v435
        %v440 = vadd.f32 %v437, %v439
        %v441 = vld [vmem:[#allocation2 + $0x2] sm:$0x1]
        %v442 = vmax.f32 %v426, %v441
        %v443 = vadd.f32 %v426, %v441
        %v444 = vld [vmem:[#allocation2 + $0x3] sm:$0x1]
        %v445 = vmax.f32 %v442, %v444
        %v446 = vadd.f32 %v443, %v444
        %v447 = vmax.f32 %v445, %v432
        %v448 = vadd.f32 %v446, %v432
        %v449 = vld [vmem:[#allocation2 + $0x9] sm:$0x1]
        %v450 = vmax.f32 %v447, %v449
        %v451 = vadd.f32 %v448, %v449
        %v452 = vld [vmem:[#allocation2 + $0xa] sm:$0x1]
        %v453 = vmax.f32 %v450, %v452
        %v454 = vadd.f32 %v451, %v452
        %v455 = vmul.f32 %v454, 0.16666667
        %v456 = vmul.f32 %v436, %v453
        %v457 = vmul.f32 %v438, %v455
        %v458 = vadd.f32 %v456, %v457
        %v459 = vld [vmem:[#allocation2 + $0x4] sm:$0x1]
        %v460 = vmax.f32 %v444, %v459
        %v461 = vadd.f32 %v444, %v459
        %v462 = vld [vmem:[#allocation2 + $0x5] sm:$0x1]
        %v463 = vmax.f32 %v460, %v462
        %v464 = vadd.f32 %v461, %v462
        %v465 = vmax.f32 %v463, %v452
        %v466 = vadd.f32 %v464, %v452
        %v467 = vld [vmem:[#allocation2 + $0xb] sm:$0x1]
        %v468 = vmax.f32 %v465, %v467
        %v469 = vadd.f32 %v466, %v467
        %v470 = vld [vmem:[#allocation2 + $0xc] sm:$0x1]
        %v471 = vmax.f32 %v468, %v470
        %v472 = vadd.f32 %v469, %v470
        %v473 = vmul.f32 %v472, 0.16666667
        %v474 = vmul.f32 %v436, %v471
        %v475 = vmul.f32 %v438, %v473
        %v476 = vadd.f32 %v474, %v475
        %v477 = vld [vmem:[#allocation2 + $0x6] sm:$0x1]
        %v478 = vmax.f32 %v462, %v477
        %v479 = vadd.f32 %v462, %v477
        %v480 = vmax.f32 %v478, %v470
        %v481 = vadd.f32 %v479, %v470
        %v482 = vld [vmem:[#allocation2 + $0xd] sm:$0x1]
        %v483 = vmax.f32 %v480, %v482
        %v484 = vadd.f32 %v481, %v482
        %v485 = vmul.f32 %v484, 0.25
        %v486 = vmul.f32 %v436, %v483
        %v487 = vmul.f32 %v438, %v485
        %v488 = vadd.f32 %v486, %v487
        %v489 = vmax.f32 %v429, %v432
        %v490 = vadd.f32 %v429, %v432
        %v491 = vld [vmem:[#allocation2 + $0xe] sm:$0x1]
        %v492 = vmax.f32 %v489, %v491
        %v493 = vadd.f32 %v490, %v491
        %v494 = vld [vmem:[#allocation2 + $0xf] sm:$0x1]
        %v495 = vmax.f32 %v492, %v494
        %v496 = vadd.f32 %v493, %v494
        %v497 = vld [vmem:[#allocation2 + $0x15] sm:$0x1]
        %v498 = vmax.f32 %v495, %v497
        %v499 = vadd.f32 %v496, %v497
        %v500 = vld [vmem:[#allocation2 + $0x16] sm:$0x1]
        %v501 = vmax.f32 %v498, %v500
        %v502 = vadd.f32 %v499, %v500
        %v503 = vmul.f32 %v502, 0.16666667
        %v504 = vmul.f32 %v436, %v501
        %v505 = vmul.f32 %v438, %v503
        %v506 = vadd.f32 %v504, %v505
        %v507 = vmax.f32 %v432, %v449
        %v508 = vadd.f32 %v432, %v449
        %v509 = vmax.f32 %v507, %v452
        %v510 = vadd.f32 %v508, %v452
        %v511 = vmax.f32 %v509, %v494
        %v512 = vadd.f32 %v510, %v494
        %v513 = vld [vmem:[#allocation2 + $0x10] sm:$0x1]
        %v514 = vmax.f32 %v511, %v513
        %v515 = vadd.f32 %v512, %v513
        %v516 = vld [vmem:[#allocation2 + $0x11] sm:$0x1]
        %v517 = vmax.f32 %v514, %v516
        %v518 = vadd.f32 %v515, %v516
        %v519 = vmax.f32 %v517, %v500
        %v520 = vadd.f32 %v518, %v500
        %v521 = vld [vmem:[#allocation2 + $0x17] sm:$0x1]
        %v522 = vmax.f32 %v519, %v521
        %v523 = vadd.f32 %v520, %v521
        %v524 = vld [vmem:[#allocation2 + $0x18] sm:$0x1]
        %v525 = vmax.f32 %v522, %v524
        %v526 = vadd.f32 %v523, %v524
        %v527 = vmul.f32 %v526, 0.11111111
        %v528 = vmul.f32 %v436, %v525
        %v529 = vmul.f32 %v438, %v527
        %v530 = vadd.f32 %v528, %v529
        %v531 = vmax.f32 %v452, %v467
        %v532 = vadd.f32 %v452, %v467
        %v533 = vmax.f32 %v531, %v470
        %v534 = vadd.f32 %v532, %v470
        %v535 = vmax.f32 %v533, %v516
        %v536 = vadd.f32 %v534, %v516
        %v537 = vld [vmem:[#allocation2 + $0x12] sm:$0x1]
        %v538 = vmax.f32 %v535, %v537
        %v539 = vadd.f32 %v536, %v537
        %v540 = vld [vmem:[#allocation2 + $0x13] sm:$0x1]
        %v541 = vmax.f32 %v538, %v540
        %v542 = vadd.f32 %v539, %v540
        %v543 = vmax.f32 %v541, %v524
        %v544 = vadd.f32 %v542, %v524
        %v545 = vld [vmem:[#allocation2 + $0x19] sm:$0x1]
        %v546 = vmax.f32 %v543, %v545
        %v547 = vadd.f32 %v544, %v545
        %v548 = vld [vmem:[#allocation2 + $0x1a] sm:$0x1]
        %v549 = vmax.f32 %v546, %v548
        %v550 = vadd.f32 %v547, %v548
        %v551 = vmul.f32 %v550, 0.11111111
        %v552 = vmul.f32 %v436, %v549
        %v553 = vmul.f32 %v438, %v551
        %v554 = vadd.f32 %v552, %v553
        %v555 = vmax.f32 %v470, %v482
        %v556 = vadd.f32 %v470, %v482
        %v557 = vmax.f32 %v555, %v540
        %v558 = vadd.f32 %v556, %v540
        %v559 = vld [vmem:[#allocation2 + $0x14] sm:$0x1]
        %v560 = vmax.f32 %v557, %v559
        %v561 = vadd.f32 %v558, %v559
        %v562 = vmax.f32 %v560, %v548
        %v563 = vadd.f32 %v561, %v548
        %v564 = vld [vmem:[#allocation2 + $0x1b] sm:$0x1]
        %v565 = vmax.f32 %v562, %v564
        %v566 = vadd.f32 %v563, %v564
        %v567 = vmul.f32 %v566, 0.16666667
        %v568 = vmul.f32 %v436, %v565
        %v569 = vmul.f32 %v438, %v567
        %v570 = vadd.f32 %v568, %v569
        %v571 = vmax.f32 %v497, %v500
        %v572 = vadd.f32 %v497, %v500
        %v573 = vld [vmem:[#allocation2 + $0x1c] sm:$0x1]
        %v574 = vmax.f32 %v571, %v573
        %v575 = vadd.f32 %v572, %v573
        %v576 = vld [vmem:[#allocation2 + $0x1d] sm:$0x1]
        %v577 = vmax.f32 %v574, %v576
        %v578 = vadd.f32 %v575, %v576
        %v579 = vld [vmem:[#allocation2 + $0x23] sm:$0x1]
        %v580 = vmax.f32 %v577, %v579
        %v581 = vadd.f32 %v578, %v579
        %v582 = vld [vmem:[#allocation2 + $0x24] sm:$0x1]
        %v583 = vmax.f32 %v580, %v582
        %v584 = vadd.f32 %v581, %v582
        %v585 = vmul.f32 %v584, 0.16666667
        %v586 = vmul.f32 %v436, %v583
        %v587 = vmul.f32 %v438, %v585
        %v588 = vadd.f32 %v586, %v587
        %v589 = vmax.f32 %v500, %v521
        %v590 = vadd.f32 %v500, %v521
        %v591 = vmax.f32 %v589, %v524
        %v592 = vadd.f32 %v590, %v524
        %v593 = vmax.f32 %v591, %v576
        %v594 = vadd.f32 %v592, %v576
        %v595 = vld [vmem:[#allocation2 + $0x1e] sm:$0x1]
        %v596 = vmax.f32 %v593, %v595
        %v597 = vadd.f32 %v594, %v595
        %v598 = vld [vmem:[#allocation2 + $0x1f] sm:$0x1]
        %v599 = vmax.f32 %v596, %v598
        %v600 = vadd.f32 %v597, %v598
        %v601 = vmax.f32 %v599, %v582
        %v602 = vadd.f32 %v600, %v582
        %v603 = vld [vmem:[#allocation2 + $0x25] sm:$0x1]
        %v604 = vmax.f32 %v601, %v603
        %v605 = vadd.f32 %v602, %v603
        %v606 = vld [vmem:[#allocation2 + $0x26] sm:$0x1]
        %v607 = vmax.f32 %v604, %v606
        %v608 = vadd.f32 %v605, %v606
        %v609 = vmul.f32 %v608, 0.11111111
        %v610 = vmul.f32 %v436, %v607
        %v611 = vmul.f32 %v438, %v609
        %v612 = vadd.f32 %v610, %v611
        %v613 = vmax.f32 %v524, %v545
        %v614 = vadd.f32 %v524, %v545
        %v615 = vmax.f32 %v613, %v548
        %v616 = vadd.f32 %v614, %v548
        %v617 = vmax.f32 %v615, %v598
        %v618 = vadd.f32 %v616, %v598
        %v619 = vld [vmem:[#allocation2 + $0x20] sm:$0x1]
        %v620 = vmax.f32 %v617, %v619
        %v621 = vadd.f32 %v618, %v619
        %v622 = vld [vmem:[#allocation2 + $0x21] sm:$0x1]
        %v623 = vmax.f32 %v620, %v622
        %v624 = vadd.f32 %v621, %v622
        %v625 = vmax.f32 %v623, %v606
        %v626 = vadd.f32 %v624, %v606
        %v627 = vld [vmem:[#allocation2 + $0x27] sm:$0x1]
        %v628 = vmax.f32 %v625, %v627
        %v629 = vadd.f32 %v626, %v627
        %v630 = vld [vmem:[#allocation2 + $0x28] sm:$0x1]
        %v631 = vmax.f32 %v628, %v630
        %v632 = vadd.f32 %v629, %v630
        %v633 = vmul.f32 %v632, 0.11111111
        %v634 = vmul.f32 %v436, %v631
        %v635 = vmul.f32 %v438, %v633
        %v636 = vadd.f32 %v634, %v635
        %v637 = vmax.f32 %v548, %v564
        %v638 = vadd.f32 %v548, %v564
        %v639 = vmax.f32 %v637, %v622
        %v640 = vadd.f32 %v638, %v622
        %v641 = vld [vmem:[#allocation2 + $0x22] sm:$0x1]
        %v642 = vmax.f32 %v639, %v641
        %v643 = vadd.f32 %v640, %v641
        %v644 = vmax.f32 %v642, %v630
        %v645 = vadd.f32 %v643, %v630
        %v646 = vld [vmem:[#allocation2 + $0x29] sm:$0x1]
        %v647 = vmax.f32 %v644, %v646
        %v648 = vadd.f32 %v645, %v646
        %v649 = vmul.f32 %v648, 0.16666667
        %v650 = vmul.f32 %v436, %v647
        %v651 = vmul.f32 %v438, %v649
        %v652 = vadd.f32 %v650, %v651
        %v653 = vmax.f32 %v579, %v582
        %v654 = vadd.f32 %v579, %v582
        %v655 = vld [vmem:[#allocation2 + $0x2a] sm:$0x1]
        %v656 = vmax.f32 %v653, %v655
        %v657 = vadd.f32 %v654, %v655
        %v658 = vld [vmem:[#allocation2 + $0x2b] sm:$0x1]
        %v659 = vmax.f32 %v656, %v658
        %v660 = vadd.f32 %v657, %v658
        %v661 = vmul.f32 %v660, 0.25
        %v662 = vmul.f32 %v436, %v659
        %v663 = vmul.f32 %v438, %v661
        %v664 = vadd.f32 %v662, %v663
        %v665 = vmax.f32 %v582, %v603
        %v666 = vadd.f32 %v582, %v603
        %v667 = vmax.f32 %v665, %v606
        %v668 = vadd.f32 %v666, %v606
        %v669 = vmax.f32 %v667, %v658
        %v670 = vadd.f32 %v668, %v658
        %v671 = vld [vmem:[#allocation2 + $0x2c] sm:$0x1]
        %v672 = vmax.f32 %v669, %v671
        %v673 = vadd.f32 %v670, %v671
        %v674 = vld [vmem:[#allocation2 + $0x2d] sm:$0x1]
        %v675 = vmax.f32 %v672, %v674
        %v676 = vadd.f32 %v673, %v674
        %v677 = vmul.f32 %v676, 0.16666667
        %v678 = vmul.f32 %v436, %v675
        %v679 = vmul.f32 %v438, %v677
        %v680 = vadd.f32 %v678, %v679
        %v681 = vmax.f32 %v606, %v627
        %v682 = vadd.f32 %v606, %v627
        %v683 = vmax.f32 %v681, %v630
        %v684 = vadd.f32 %v682, %v630
        %v685 = vmax.f32 %v683, %v674
        %v686 = vadd.f32 %v684, %v674
        %v687 = vld [vmem:[#allocation2 + $0x2e] sm:$0x1]
        %v688 = vmax.f32 %v685, %v687
        %v689 = vadd.f32 %v686, %v687
        %v690 = vld [vmem:[#allocation2 + $0x2f] sm:$0x1]
        %v691 = vmax.f32 %v688, %v690
        %v692 = vadd.f32 %v689, %v690
        %v693 = vmul.f32 %v692, 0.16666667
        %v694 = vmul.f32 %v436, %v691
        %v695 = vmul.f32 %v438, %v693
        %v696 = vadd.f32 %v694, %v695
        %v697 = vmax.f32 %v630, %v646
        %v698 = vadd.f32 %v630, %v646
        %v699 = vmax.f32 %v697, %v690
        %v700 = vadd.f32 %v698, %v690
        %v701 = vld [vmem:[#allocation2 + $0x30] sm:$0x1]
        %v702 = vmax.f32 %v699, %v701
        %v703 = vadd.f32 %v700, %v701
        %v704 = vmul.f32 %v703, 0.25
        %v705 = vmul.f32 %v436, %v702
        %v706 = vmul.f32 %v438, %v704
        %v707 = vadd.f32 %v705, %v706
        %709 = vrot.lane.b32.xlu0 %v458, 2
        %v710 = vpop.permute.xlu0 %709
        %713 = vrot.lane.b32.xlu0 %v476, 4
        %v714 = vpop.permute.xlu0 %713
        %717 = vrot.lane.b32.xlu0 %v488, 6
        %v718 = vpop.permute.xlu0 %717
        %721 = vrot.lane.b32.xlu0 %v506, 8
        %v722 = vpop.permute.xlu0 %721
        %725 = vrot.lane.b32.xlu0 %v530, 10
        %v726 = vpop.permute.xlu0 %725
        %729 = vrot.lane.b32.xlu0 %v554, 12
        %v730 = vpop.permute.xlu0 %729
        %733 = vrot.lane.b32.xlu0 %v570, 14
        %v734 = vpop.permute.xlu0 %733
        %737 = vrot.lane.b32.xlu0 %v588, 16
        %v738 = vpop.permute.xlu0 %737
        %741 = vrot.lane.b32.xlu0 %v612, 18
        %v742 = vpop.permute.xlu0 %741
        %745 = vrot.lane.b32.xlu0 %v636, 20
        %v746 = vpop.permute.xlu0 %745
        %749 = vrot.lane.b32.xlu0 %v652, 22
        %v750 = vpop.permute.xlu0 %749
        %753 = vrot.lane.b32.xlu0 %v664, 24
        %v754 = vpop.permute.xlu0 %753
        %757 = vrot.lane.b32.xlu0 %v680, 26
        %v758 = vpop.permute.xlu0 %757
        %761 = vrot.lane.b32.xlu0 %v696, 28
        %v762 = vpop.permute.xlu0 %761
        %765 = vrot.lane.b32.xlu0 %v707, 30
        %v766 = vpop.permute.xlu0 %765
        %v768 = vsel %vm415, %v440, %v710
        %vm769 = vcmask 31744
        %v770 = vsel %vm769, %v768, %v714
        %vm771 = vcmask 48128
        %v772 = vsel %vm771, %v770, %v718
        %vm773 = vcmask 64512
        %v774 = vsel %vm773, %v772, %v722
        %vm775 = vcmask 80896
        %v776 = vsel %vm775, %v774, %v726
        %vm777 = vcmask 97280
        %v778 = vsel %vm777, %v776, %v730
        %vm779 = vcmask 113664
        %v780 = vsel %vm779, %v778, %v734
        %vm781 = vcmask 130048
        %v782 = vsel %vm781, %v780, %v738
        %vm783 = vcmask 146432
        %v784 = vsel %vm783, %v782, %v742
        %vm785 = vcmask 162816
        %v786 = vsel %vm785, %v784, %v746
        %vm787 = vcmask 179200
        %v788 = vsel %vm787, %v786, %v750
        %vm789 = vcmask 195584
        %v790 = vsel %vm789, %v788, %v754
        %vm791 = vcmask 211968
        %v792 = vsel %vm791, %v790, %v758
        %vm793 = vcmask 228352
        %v794 = vsel %vm793, %v792, %v762
        %vm795 = vcmask 244736
        %v796 = vsel %vm795, %v794, %v766
        %v797 = vld [vmem:[%s5] sm:$0xff]
        %v798 = vld [vmem:[%s5 + $0x8] sm:$0xff]
        %v799 = vld [vmem:[%s5 + $0x10] sm:$0xff]
        %v800 = vld [vmem:[%s5 + $0x18] sm:$0xff]
        %v801 = vld [vmem:[%s319] sm:$0x1]
        %v802 = vld [vmem:[%s6] sm:$0xff]
        %v803 = vld [vmem:[%s6 + $0x8] sm:$0x3]
        %v805 = vsel %vm775, %v801, 0
        %v808 = vsel %vm383, %v803, 0
        %810 = vmatpush.msra.mxu0 0.0
        %811 = vmatpush.msra.mxu0 0.0
        %812 = vmatpush.msra.mxu0 0.0
        %813 = vmatpush.msra.mxu0 0.0
        %814 = vmatpush.msra.mxu0 0.0
        %815 = vmatpush.msra.mxu0 0.0
        %816 = vmatpush.msra.mxu0 0.0
        %817 = vmatpush.msra.mxu0 0.0
        %818 = vmatpush.msra.mxu0 0.0
        %819 = vmatpush.msra.mxu0 0.0
        %820 = vmatpush.msra.mxu0 0.0
        %821 = vmatpush.msra.mxu0 0.0
        %822 = vmatpush.msra.mxu0 0.0
        %823 = vmatpush.msra.mxu0 0.0
        %824 = vmatpush.msra.mxu0 %v808
        %825 = vmatpush.msra.mxu0 %v802
        %826 = vmatmul.f32.gmra.mxu0 %v805
        %v827 = vpop.f32.mrf.mxu0
        %v828 = vadd.f32 0.0, %v827
        %829 = vdwg.mxu0
        %vm830 = vcmask 261120
        %v832 = vsel %vm830, %v796, 0
        %834 = vmatpush.msra.mxu0 0.0
        %835 = vmatpush.msra.mxu0 0.0
        %836 = vmatpush.msra.mxu0 0.0
        %837 = vmatpush.msra.mxu0 0.0
        %838 = vmatpush.msra.mxu0 0.0
        %839 = vmatpush.msra.mxu0 0.0
        %840 = vmatpush.msra.mxu0 0.0
        %841 = vmatpush.msra.mxu0 0.0
        %842 = vmatpush.msra.mxu0 0.0
        %843 = vmatpush.msra.mxu0 0.0
        %844 = vmatpush.msra.mxu0 0.0
        %845 = vmatpush.msra.mxu0 0.0
        %846 = vmatpush.msra.mxu0 %v800
        %847 = vmatpush.msra.mxu0 %v799
        %848 = vmatpush.msra.mxu0 %v798
        %849 = vmatpush.msra.mxu0 %v797
        %850 = vmatmul.f32.gmra.mxu0 %v832
        %v851 = vpop.f32.mrf.mxu0
        %v852 = vadd.f32 %v828, %v851
        %853 = vdwg.mxu0
        %v854 = vld [vmem:[%s7] sm:$0x1]
        %v855 = vadd.f32 %v852, %v854
        %vm856 = vcmask 73728
        %857 = vst.msk [vmem:[%s310] sm:$0x1] %vm856, %v855
        %s858 = sand.u32 %s209, 1
        %s859 = scalar_lea.sflag [#allocation5], %s858
        %s860 = sand.u32 %s209, 1
        %s861 = scalar_lea.vmem [#allocation4], %s860
        // Predicated region
        $region53: #{tpu_custom_call.1} parent=51 // pred_check
          %p862 = pneg %p219
        $region54: #{tpu_custom_call.1} parent=51 // pred_check_branch
          %864 = sbr.rel (%p862) target = $region56
        $region55: #{tpu_custom_call.1} parent=51 // pred_region
          %866 = vsyncadd %s859, 0
          %s867 = scalar_lea.hbm %s8, %s23
          %s869 = sshll.u32 %s861, 4
          %s870 = int_to_ptr.vmem [resolvable:$true] %s869
          %s871 = sshll.u32 %s867, 4
          %s872 = int_to_ptr.hbm [resolvable:$true] %s871
          %874 = dma.vmem_to_hbm [thread:$0]  %s870, 16, %s872, %s859
        $region56: #{tpu_custom_call.1} parent=51 // pred_fallthru
          _
      $region52: #{tpu_custom_call.1} parent=5 // pred_fallthru
        _
      %p875 = scmp.le.s32.totalorder 2, %s18
      // Predicated region
      $region57: #{tpu_custom_call.1} parent=5 // pred_check
        %p876 = pneg %p875
      $region58: #{tpu_custom_call.1} parent=5 // pred_check_branch
        %878 = sbr.rel (%p876) target = $region60
      $region59: #{tpu_custom_call.1} parent=5 // pred_region
        %s879 = ssub.s32 %s18, 2
        // Predicated region
        $region61: #{tpu_custom_call.1} parent=59 // pred_check
          %p880 = pneg %p225
        $region62: #{tpu_custom_call.1} parent=59 // pred_check_branch
          %882 = sbr.rel (%p880) target = $region64
        $region63: #{tpu_custom_call.1} parent=59 // pred_region
          %s883 = sand.u32 %s210, 1
          %s884 = scalar_lea.sflag [#allocation5], %s883
          %s885 = sand.u32 %s210, 1
          %s886 = scalar_lea.vmem [#allocation4], %s885
          %888 = dma.done %s884, 16
        $region64: #{tpu_custom_call.1} parent=59 // pred_fallthru
          _
      $region60: #{tpu_custom_call.1} parent=5 // pred_fallthru
        _
    $region6: #{tpu_custom_call.1} parent=1 // loop_footer
      %s22 = sadd.s32 1, %s18
    $region7: #{tpu_custom_call.1} parent=1 // loop_footer_branch
      %17 = sbr.rel target = $region3
    $region8: #{tpu_custom_call.1} parent=1 // loop_exit
      _
    %889 = vsyncpa [#allocation5], 1
    %s890 = scalar_lea.sflag [#allocation5], 1
    %891 = vsyncpa %s890, 1

</llo_original>
